<compile_context>
chip_gen: v6e
topology: v6e:2x2x1
jax: 0.10.0
libtpu: 0.0.40
codegen_flags: <defaults>
</compile_context>

<pallas_src>
import jax
import jax.numpy as jnp
import numpy as np
from jax import lax
from jax.experimental import pallas as pl
from jax.experimental.pallas import tpu as pltpu


# ----------------------------------------------------------------------------
# Fused kernel: the entire generator for one image per grid step.
# ----------------------------------------------------------------------------
def _ct_relu_layer(h, a_ref, s_ref):
    """One ConvTranspose2d(bias=False) + ReLU.

    h:     (Hi, Cin*Wi)          bf16 activation, flattened (ci, iw) lane-dense.
    a_ref: (k, Cin*Wi, Cout*Wo)  bf16; A[kh, ci*Wi+iw, co*Wo+ow] = w[ci, co, kh, kw]
                                 with kw = ow - stride*iw + padding (0 if out of range).
    s_ref: (k, Ho, Hi)           bf16 0/1; S[kh, oh, ih] = (oh == stride*ih - padding + kh).
    Returns (Ho, Cout*Wo) float32, post-ReLU.
    """
    k, ho, _ = s_ref.shape
    cout_wo = a_ref.shape[2]
    acc = jnp.zeros((ho, cout_wo), jnp.float32)
    for kh in range(k):  # static unroll: k = 4 / 4 / 2
        # Exact row gather of the input rows to the output rows this kernel row feeds.
        g = jnp.dot(s_ref[kh], h, preferred_element_type=jnp.float32)
        g = g.astype(jnp.bfloat16)
        # Weights + stride-2 structure along W, contracted over (Cin, Wi) on the MXU.
        acc = acc + jnp.dot(g, a_ref[kh], preferred_element_type=jnp.float32)
    return jnp.maximum(acc, 0.0)


def _genecal_kernel(x_ref, a1_ref, s1_ref, a2_ref, s2_ref, a3_ref, s3_ref, o_ref):
    h = x_ref[0]                                                 # (H1, nz*W1)   bf16
    h = _ct_relu_layer(h, a1_ref, s1_ref).astype(jnp.bfloat16)   # (H2, 2nf*W2)
    h = _ct_relu_layer(h, a2_ref, s2_ref).astype(jnp.bfloat16)   # (H3, nf*W3)
    h = _ct_relu_layer(h, a3_ref, s3_ref)                        # (H4, nc*W4)   f32
    o_ref[0] = h


# ----------------------------------------------------------------------------
# Init-time weight folding (once per model, not per forward call).
# ----------------------------------------------------------------------------
def _tap_matrices(w, stride, padding, hi, wi):
    """Fold one PyTorch ConvTranspose2d weight (Cin, Cout, k, k) into per-kh operands."""
    cin, cout, k, _ = w.shape
    ho = (hi - 1) * stride - 2 * padding + k
    wo = (wi - 1) * stride - 2 * padding + k

    kw = jnp.arange(k)[:, None, None]
    iw = jnp.arange(wi)[None, :, None]
    ow = jnp.arange(wo)[None, None, :]
    m = (ow == stride * iw - padding + kw).astype(jnp.float32)       # (k, Wi, Wo)
    a = jnp.einsum("cdhk,kio->hcido", w.astype(jnp.float32), m)      # (k,Cin,Wi,Cout,Wo)
    a = a.reshape(k, cin * wi, cout * wo).astype(jnp.bfloat16)

    kh = jnp.arange(k)[:, None, None]
    oh = jnp.arange(ho)[None, :, None]
    ih = jnp.arange(hi)[None, None, :]
    s = (oh == stride * ih - padding + kh).astype(jnp.bfloat16)      # (k, Ho, Hi)
    return a, s, ho, wo


def prepare_gen_ecal(params, h_in, w_in):
    """One-time weight preparation; reuse the result for every forward call."""
    w1, w2, w3 = params
    a1, s1, h1, ww1 = _tap_matrices(w1, stride=2, padding=1, hi=h_in, wi=w_in)
    a2, s2, h2, ww2 = _tap_matrices(w2, stride=2, padding=1, hi=h1, wi=ww1)
    a3, s3, _, _ = _tap_matrices(w3, stride=2, padding=0, hi=h2, wi=ww2)
    return (a1, s1, a2, s2, a3, s3)


# ----------------------------------------------------------------------------
# Forward pass (single fused pallas_call).
# ----------------------------------------------------------------------------
def gen_ecal_forward(x, prepared, nc):
    """x: (N, nz, H, W) NCHW -> (N, nc, 8H, 8W).  All three ConvT+ReLU layers fused."""
    a1, s1, a2, s2, a3, s3 = prepared
    n, cin, hi, wi = x.shape
    assert a1.shape[1] == cin * wi and s1.shape[2] == hi, "prepared params / input mismatch"
    ho = int(s3.shape[1])
    wo = int(a3.shape[2]) // nc

    # NCHW -> (N, H, Cin*W): H in sublanes, flattened (channel, width) lane-dense.
    xm = jnp.transpose(x, (0, 2, 1, 3)).reshape(n, hi, cin * wi).astype(jnp.bfloat16)

    def full_spec(arr):
        return pl.BlockSpec(arr.shape, lambda b: (0,) * arr.ndim)

    out = pl.pallas_call(
        _genecal_kernel,
        out_shape=jax.ShapeDtypeStruct((n, ho, nc * wo), jnp.float32),
        grid=(n,),
        in_specs=[
            pl.BlockSpec((1, hi, cin * wi), lambda b: (b, 0, 0)),
            full_spec(a1), full_spec(s1),
            full_spec(a2), full_spec(s2),
            full_spec(a3), full_spec(s3),
        ],
        out_specs=pl.BlockSpec((1, ho, nc * wo), lambda b: (b, 0, 0)),
        compiler_params=pltpu.CompilerParams(dimension_semantics=("parallel",)),
    )(xm, a1, s1, a2, s2, a3, s3)

    # (N, Ho, nc*Wo) -> NCHW
    return jnp.transpose(out.reshape(n, ho, nc, wo), (0, 2, 1, 3))


# ----------------------------------------------------------------------------
# Pure-XLA reference (same bf16 input rounding as the kernel) + init.
# ----------------------------------------------------------------------------
def _conv_transpose2d_ref(x, w, stride, padding):
    """Reference for F.conv_transpose2d(x, w, stride=stride, padding=padding, bias=False)."""
    k = w.shape[2]
    w_flip = jnp.transpose(jnp.flip(w, (2, 3)), (1, 0, 2, 3))   # (Cout, Cin, k, k)
    pad = k - 1 - padding
    return lax.conv_general_dilated(
        x, w_flip,
        window_strides=(1, 1),
        padding=[(pad, pad), (pad, pad)],
        lhs_dilation=(stride, stride),
        rhs_dilation=(1, 1),
        dimension_numbers=("NCHW", "OIHW", "NCHW"),
        precision=lax.Precision.HIGHEST,
    )


def gen_ecal_reference(x, params):
    w1, w2, w3 = params
    bf = lambda t: t.astype(jnp.bfloat16).astype(jnp.float32)
    h = jax.nn.relu(_conv_transpose2d_ref(bf(x), bf(w1), 2, 1))
    h = jax.nn.relu(_conv_transpose2d_ref(bf(h), bf(w2), 2, 1))
    h = jax.nn.relu(_conv_transpose2d_ref(bf(h), bf(w3), 2, 0))
    return h


def init_params(key, nz, nf, nc, scale=0.25):
    k1, k2, k3 = jax.random.split(key, 3)
    # PyTorch ConvTranspose2d weight layout: (in_channels, out_channels, kH, kW).
    w1 = scale * jax.random.normal(k1, (nz, nf * 2, 4, 4), jnp.float32)
    w2 = scale * jax.random.normal(k2, (nf * 2, nf, 4, 4), jnp.float32)
    w3 = scale * jax.random.normal(k3, (nf, nc, 2, 2), jnp.float32)
    return (w1, w2, w3)


if __name__ == "__main__":
    nz, nf, nc = 4, 4, 3
    batch, h_in, w_in = 2, 8, 8            # output spatial = 8x input = 64x64

    key = jax.random.PRNGKey(0)
    pkey, xkey = jax.random.split(key)
    params = init_params(pkey, nz, nf, nc)
    x = jax.random.normal(xkey, (batch, nz, h_in, w_in), jnp.float32)

    prepared = prepare_gen_ecal(params, h_in, w_in)   # init-time weight folding
    fwd = jax.jit(gen_ecal_forward, static_argnums=2)

    out = jax.block_until_ready(fwd(x, prepared, nc))

    assert out.shape == (batch, nc, 8 * h_in, 8 * w_in), out.shape
    assert bool(jnp.all(out >= 0.0))                  # final ReLU (as in the module)

    ref = gen_ecal_reference(x, params)
    np.testing.assert_allclose(np.asarray(out), np.asarray(ref), rtol=2e-2, atol=1e-3)
    print("KERNEL_OK")
</pallas_src>

<mosaic_0001>
module attributes {stable_mosaic.version = 11 : i64} {
  func.func @_genecal_kernel(%arg0: i32, %arg1: memref<1x8x32xbf16, #tpu.memory_space<vmem>>, %arg2: memref<4x32x128xbf16, #tpu.memory_space<vmem>>, %arg3: memref<4x16x8xbf16, #tpu.memory_space<vmem>>, %arg4: memref<4x128x128xbf16, #tpu.memory_space<vmem>>, %arg5: memref<4x32x16xbf16, #tpu.memory_space<vmem>>, %arg6: memref<2x128x192xbf16, #tpu.memory_space<vmem>>, %arg7: memref<2x64x32xbf16, #tpu.memory_space<vmem>>, %arg8: memref<1x64x192xf32, #tpu.memory_space<vmem>>) attributes {dimension_semantics = [#tpu.dimension_semantics<parallel>], iteration_bounds = array<i64: 2>, scalar_prefetch = 0 : i64, scratch_operands = 0 : i64, tpu.core_type = #tpu.core_type<tc>, window_params = [{transform_indices = @transform_0, window_bounds = array<i64: 1, 8, 32>}, {pipeline_mode = #tpu.pipeline_mode<synchronous>, transform_indices = @transform_1, window_bounds = array<i64: 4, 32, 128>}, {pipeline_mode = #tpu.pipeline_mode<synchronous>, transform_indices = @transform_2, window_bounds = array<i64: 4, 16, 8>}, {pipeline_mode = #tpu.pipeline_mode<synchronous>, transform_indices = @transform_3, window_bounds = array<i64: 4, 128, 128>}, {pipeline_mode = #tpu.pipeline_mode<synchronous>, transform_indices = @transform_4, window_bounds = array<i64: 4, 32, 16>}, {pipeline_mode = #tpu.pipeline_mode<synchronous>, transform_indices = @transform_5, window_bounds = array<i64: 2, 128, 192>}, {pipeline_mode = #tpu.pipeline_mode<synchronous>, transform_indices = @transform_6, window_bounds = array<i64: 2, 64, 32>}, {transform_indices = @transform_7, window_bounds = array<i64: 1, 64, 192>}]} {
    %c0 = arith.constant 0 : index
    %c0_0 = arith.constant 0 : index
    %c0_1 = arith.constant 0 : index
    %0 = vector.load %arg1[%c0, %c0_0, %c0_1] : memref<1x8x32xbf16, #tpu.memory_space<vmem>>, vector<1x8x32xbf16>
    %1 = vector.shape_cast %0 : vector<1x8x32xbf16> to vector<8x32xbf16>
    %cst = arith.constant 0.000000e+00 : f32
    %2 = vector.broadcast %cst : f32 to vector<16x128xf32>
    %c0_2 = arith.constant 0 : index
    %c0_3 = arith.constant 0 : index
    %c0_4 = arith.constant 0 : index
    %3 = vector.load %arg3[%c0_2, %c0_3, %c0_4] : memref<4x16x8xbf16, #tpu.memory_space<vmem>>, vector<1x16x8xbf16>
    %4 = vector.shape_cast %3 : vector<1x16x8xbf16> to vector<16x8xbf16>
    %cst_5 = arith.constant dense<0.000000e+00> : vector<16x32xf32>
    %5 = tpu.matmul %4, %1, %cst_5 {dimension_numbers = #tpu.dot_dimension_numbers<[1], [0], [0], [1], [0, 0, 1, 1], [], []>} : vector<16x8xbf16>, vector<8x32xbf16>, vector<16x32xf32> -> vector<16x32xf32>
    %6 = arith.truncf %5 : vector<16x32xf32> to vector<16x32xbf16>
    %c0_6 = arith.constant 0 : index
    %c0_7 = arith.constant 0 : index
    %c0_8 = arith.constant 0 : index
    %7 = vector.load %arg2[%c0_6, %c0_7, %c0_8] : memref<4x32x128xbf16, #tpu.memory_space<vmem>>, vector<1x32x128xbf16>
    %8 = vector.shape_cast %7 : vector<1x32x128xbf16> to vector<32x128xbf16>
    %cst_9 = arith.constant dense<0.000000e+00> : vector<16x128xf32>
    %9 = tpu.matmul %6, %8, %cst_9 {dimension_numbers = #tpu.dot_dimension_numbers<[1], [0], [0], [1], [0, 0, 1, 1], [], []>} : vector<16x32xbf16>, vector<32x128xbf16>, vector<16x128xf32> -> vector<16x128xf32>
    %10 = arith.addf %2, %9 : vector<16x128xf32>
    %c1 = arith.constant 1 : index
    %c0_10 = arith.constant 0 : index
    %c0_11 = arith.constant 0 : index
    %11 = vector.load %arg3[%c1, %c0_10, %c0_11] : memref<4x16x8xbf16, #tpu.memory_space<vmem>>, vector<1x16x8xbf16>
    %12 = vector.shape_cast %11 : vector<1x16x8xbf16> to vector<16x8xbf16>
    %cst_12 = arith.constant dense<0.000000e+00> : vector<16x32xf32>
    %13 = tpu.matmul %12, %1, %cst_12 {dimension_numbers = #tpu.dot_dimension_numbers<[1], [0], [0], [1], [0, 0, 1, 1], [], []>} : vector<16x8xbf16>, vector<8x32xbf16>, vector<16x32xf32> -> vector<16x32xf32>
    %14 = arith.truncf %13 : vector<16x32xf32> to vector<16x32xbf16>
    %c1_13 = arith.constant 1 : index
    %c0_14 = arith.constant 0 : index
    %c0_15 = arith.constant 0 : index
    %15 = vector.load %arg2[%c1_13, %c0_14, %c0_15] : memref<4x32x128xbf16, #tpu.memory_space<vmem>>, vector<1x32x128xbf16>
    %16 = vector.shape_cast %15 : vector<1x32x128xbf16> to vector<32x128xbf16>
    %cst_16 = arith.constant dense<0.000000e+00> : vector<16x128xf32>
    %17 = tpu.matmul %14, %16, %cst_16 {dimension_numbers = #tpu.dot_dimension_numbers<[1], [0], [0], [1], [0, 0, 1, 1], [], []>} : vector<16x32xbf16>, vector<32x128xbf16>, vector<16x128xf32> -> vector<16x128xf32>
    %18 = arith.addf %10, %17 : vector<16x128xf32>
    %c2 = arith.constant 2 : index
    %c0_17 = arith.constant 0 : index
    %c0_18 = arith.constant 0 : index
    %19 = vector.load %arg3[%c2, %c0_17, %c0_18] : memref<4x16x8xbf16, #tpu.memory_space<vmem>>, vector<1x16x8xbf16>
    %20 = vector.shape_cast %19 : vector<1x16x8xbf16> to vector<16x8xbf16>
    %cst_19 = arith.constant dense<0.000000e+00> : vector<16x32xf32>
    %21 = tpu.matmul %20, %1, %cst_19 {dimension_numbers = #tpu.dot_dimension_numbers<[1], [0], [0], [1], [0, 0, 1, 1], [], []>} : vector<16x8xbf16>, vector<8x32xbf16>, vector<16x32xf32> -> vector<16x32xf32>
    %22 = arith.truncf %21 : vector<16x32xf32> to vector<16x32xbf16>
    %c2_20 = arith.constant 2 : index
    %c0_21 = arith.constant 0 : index
    %c0_22 = arith.constant 0 : index
    %23 = vector.load %arg2[%c2_20, %c0_21, %c0_22] : memref<4x32x128xbf16, #tpu.memory_space<vmem>>, vector<1x32x128xbf16>
    %24 = vector.shape_cast %23 : vector<1x32x128xbf16> to vector<32x128xbf16>
    %cst_23 = arith.constant dense<0.000000e+00> : vector<16x128xf32>
    %25 = tpu.matmul %22, %24, %cst_23 {dimension_numbers = #tpu.dot_dimension_numbers<[1], [0], [0], [1], [0, 0, 1, 1], [], []>} : vector<16x32xbf16>, vector<32x128xbf16>, vector<16x128xf32> -> vector<16x128xf32>
    %26 = arith.addf %18, %25 : vector<16x128xf32>
    %c3 = arith.constant 3 : index
    %c0_24 = arith.constant 0 : index
    %c0_25 = arith.constant 0 : index
    %27 = vector.load %arg3[%c3, %c0_24, %c0_25] : memref<4x16x8xbf16, #tpu.memory_space<vmem>>, vector<1x16x8xbf16>
    %28 = vector.shape_cast %27 : vector<1x16x8xbf16> to vector<16x8xbf16>
    %cst_26 = arith.constant dense<0.000000e+00> : vector<16x32xf32>
    %29 = tpu.matmul %28, %1, %cst_26 {dimension_numbers = #tpu.dot_dimension_numbers<[1], [0], [0], [1], [0, 0, 1, 1], [], []>} : vector<16x8xbf16>, vector<8x32xbf16>, vector<16x32xf32> -> vector<16x32xf32>
    %30 = arith.truncf %29 : vector<16x32xf32> to vector<16x32xbf16>
    %c3_27 = arith.constant 3 : index
    %c0_28 = arith.constant 0 : index
    %c0_29 = arith.constant 0 : index
    %31 = vector.load %arg2[%c3_27, %c0_28, %c0_29] : memref<4x32x128xbf16, #tpu.memory_space<vmem>>, vector<1x32x128xbf16>
    %32 = vector.shape_cast %31 : vector<1x32x128xbf16> to vector<32x128xbf16>
    %cst_30 = arith.constant dense<0.000000e+00> : vector<16x128xf32>
    %33 = tpu.matmul %30, %32, %cst_30 {dimension_numbers = #tpu.dot_dimension_numbers<[1], [0], [0], [1], [0, 0, 1, 1], [], []>} : vector<16x32xbf16>, vector<32x128xbf16>, vector<16x128xf32> -> vector<16x128xf32>
    %34 = arith.addf %26, %33 : vector<16x128xf32>
    %cst_31 = arith.constant 0.000000e+00 : f32
    %35 = vector.broadcast %cst_31 : f32 to vector<16x128xf32>
    %36 = arith.maximumf %34, %35 : vector<16x128xf32>
    %37 = arith.truncf %36 : vector<16x128xf32> to vector<16x128xbf16>
    %cst_32 = arith.constant 0.000000e+00 : f32
    %38 = vector.broadcast %cst_32 : f32 to vector<32x128xf32>
    %c0_33 = arith.constant 0 : index
    %c0_34 = arith.constant 0 : index
    %c0_35 = arith.constant 0 : index
    %39 = vector.load %arg5[%c0_33, %c0_34, %c0_35] : memref<4x32x16xbf16, #tpu.memory_space<vmem>>, vector<1x32x16xbf16>
    %40 = vector.shape_cast %39 : vector<1x32x16xbf16> to vector<32x16xbf16>
    %cst_36 = arith.constant dense<0.000000e+00> : vector<32x128xf32>
    %41 = tpu.matmul %40, %37, %cst_36 {dimension_numbers = #tpu.dot_dimension_numbers<[1], [0], [0], [1], [0, 0, 1, 1], [], []>} : vector<32x16xbf16>, vector<16x128xbf16>, vector<32x128xf32> -> vector<32x128xf32>
    %42 = arith.truncf %41 : vector<32x128xf32> to vector<32x128xbf16>
    %c0_37 = arith.constant 0 : index
    %c0_38 = arith.constant 0 : index
    %c0_39 = arith.constant 0 : index
    %43 = vector.load %arg4[%c0_37, %c0_38, %c0_39] : memref<4x128x128xbf16, #tpu.memory_space<vmem>>, vector<1x128x128xbf16>
    %44 = vector.shape_cast %43 : vector<1x128x128xbf16> to vector<128x128xbf16>
    %cst_40 = arith.constant dense<0.000000e+00> : vector<32x128xf32>
    %45 = tpu.matmul %42, %44, %cst_40 {dimension_numbers = #tpu.dot_dimension_numbers<[1], [0], [0], [1], [0, 0, 1, 1], [], []>} : vector<32x128xbf16>, vector<128x128xbf16>, vector<32x128xf32> -> vector<32x128xf32>
    %46 = arith.addf %38, %45 : vector<32x128xf32>
    %c1_41 = arith.constant 1 : index
    %c0_42 = arith.constant 0 : index
    %c0_43 = arith.constant 0 : index
    %47 = vector.load %arg5[%c1_41, %c0_42, %c0_43] : memref<4x32x16xbf16, #tpu.memory_space<vmem>>, vector<1x32x16xbf16>
    %48 = vector.shape_cast %47 : vector<1x32x16xbf16> to vector<32x16xbf16>
    %cst_44 = arith.constant dense<0.000000e+00> : vector<32x128xf32>
    %49 = tpu.matmul %48, %37, %cst_44 {dimension_numbers = #tpu.dot_dimension_numbers<[1], [0], [0], [1], [0, 0, 1, 1], [], []>} : vector<32x16xbf16>, vector<16x128xbf16>, vector<32x128xf32> -> vector<32x128xf32>
    %50 = arith.truncf %49 : vector<32x128xf32> to vector<32x128xbf16>
    %c1_45 = arith.constant 1 : index
    %c0_46 = arith.constant 0 : index
    %c0_47 = arith.constant 0 : index
    %51 = vector.load %arg4[%c1_45, %c0_46, %c0_47] : memref<4x128x128xbf16, #tpu.memory_space<vmem>>, vector<1x128x128xbf16>
    %52 = vector.shape_cast %51 : vector<1x128x128xbf16> to vector<128x128xbf16>
    %cst_48 = arith.constant dense<0.000000e+00> : vector<32x128xf32>
    %53 = tpu.matmul %50, %52, %cst_48 {dimension_numbers = #tpu.dot_dimension_numbers<[1], [0], [0], [1], [0, 0, 1, 1], [], []>} : vector<32x128xbf16>, vector<128x128xbf16>, vector<32x128xf32> -> vector<32x128xf32>
    %54 = arith.addf %46, %53 : vector<32x128xf32>
    %c2_49 = arith.constant 2 : index
    %c0_50 = arith.constant 0 : index
    %c0_51 = arith.constant 0 : index
    %55 = vector.load %arg5[%c2_49, %c0_50, %c0_51] : memref<4x32x16xbf16, #tpu.memory_space<vmem>>, vector<1x32x16xbf16>
    %56 = vector.shape_cast %55 : vector<1x32x16xbf16> to vector<32x16xbf16>
    %cst_52 = arith.constant dense<0.000000e+00> : vector<32x128xf32>
    %57 = tpu.matmul %56, %37, %cst_52 {dimension_numbers = #tpu.dot_dimension_numbers<[1], [0], [0], [1], [0, 0, 1, 1], [], []>} : vector<32x16xbf16>, vector<16x128xbf16>, vector<32x128xf32> -> vector<32x128xf32>
    %58 = arith.truncf %57 : vector<32x128xf32> to vector<32x128xbf16>
    %c2_53 = arith.constant 2 : index
    %c0_54 = arith.constant 0 : index
    %c0_55 = arith.constant 0 : index
    %59 = vector.load %arg4[%c2_53, %c0_54, %c0_55] : memref<4x128x128xbf16, #tpu.memory_space<vmem>>, vector<1x128x128xbf16>
    %60 = vector.shape_cast %59 : vector<1x128x128xbf16> to vector<128x128xbf16>
    %cst_56 = arith.constant dense<0.000000e+00> : vector<32x128xf32>
    %61 = tpu.matmul %58, %60, %cst_56 {dimension_numbers = #tpu.dot_dimension_numbers<[1], [0], [0], [1], [0, 0, 1, 1], [], []>} : vector<32x128xbf16>, vector<128x128xbf16>, vector<32x128xf32> -> vector<32x128xf32>
    %62 = arith.addf %54, %61 : vector<32x128xf32>
    %c3_57 = arith.constant 3 : index
    %c0_58 = arith.constant 0 : index
    %c0_59 = arith.constant 0 : index
    %63 = vector.load %arg5[%c3_57, %c0_58, %c0_59] : memref<4x32x16xbf16, #tpu.memory_space<vmem>>, vector<1x32x16xbf16>
    %64 = vector.shape_cast %63 : vector<1x32x16xbf16> to vector<32x16xbf16>
    %cst_60 = arith.constant dense<0.000000e+00> : vector<32x128xf32>
    %65 = tpu.matmul %64, %37, %cst_60 {dimension_numbers = #tpu.dot_dimension_numbers<[1], [0], [0], [1], [0, 0, 1, 1], [], []>} : vector<32x16xbf16>, vector<16x128xbf16>, vector<32x128xf32> -> vector<32x128xf32>
    %66 = arith.truncf %65 : vector<32x128xf32> to vector<32x128xbf16>
    %c3_61 = arith.constant 3 : index
    %c0_62 = arith.constant 0 : index
    %c0_63 = arith.constant 0 : index
    %67 = vector.load %arg4[%c3_61, %c0_62, %c0_63] : memref<4x128x128xbf16, #tpu.memory_space<vmem>>, vector<1x128x128xbf16>
    %68 = vector.shape_cast %67 : vector<1x128x128xbf16> to vector<128x128xbf16>
    %cst_64 = arith.constant dense<0.000000e+00> : vector<32x128xf32>
    %69 = tpu.matmul %66, %68, %cst_64 {dimension_numbers = #tpu.dot_dimension_numbers<[1], [0], [0], [1], [0, 0, 1, 1], [], []>} : vector<32x128xbf16>, vector<128x128xbf16>, vector<32x128xf32> -> vector<32x128xf32>
    %70 = arith.addf %62, %69 : vector<32x128xf32>
    %cst_65 = arith.constant 0.000000e+00 : f32
    %71 = vector.broadcast %cst_65 : f32 to vector<32x128xf32>
    %72 = arith.maximumf %70, %71 : vector<32x128xf32>
    %73 = arith.truncf %72 : vector<32x128xf32> to vector<32x128xbf16>
    %cst_66 = arith.constant 0.000000e+00 : f32
    %74 = vector.broadcast %cst_66 : f32 to vector<64x192xf32>
    %c0_67 = arith.constant 0 : index
    %c0_68 = arith.constant 0 : index
    %c0_69 = arith.constant 0 : index
    %75 = vector.load %arg7[%c0_67, %c0_68, %c0_69] : memref<2x64x32xbf16, #tpu.memory_space<vmem>>, vector<1x64x32xbf16>
    %76 = vector.shape_cast %75 : vector<1x64x32xbf16> to vector<64x32xbf16>
    %cst_70 = arith.constant dense<0.000000e+00> : vector<64x128xf32>
    %77 = tpu.matmul %76, %73, %cst_70 {dimension_numbers = #tpu.dot_dimension_numbers<[1], [0], [0], [1], [0, 0, 1, 1], [], []>} : vector<64x32xbf16>, vector<32x128xbf16>, vector<64x128xf32> -> vector<64x128xf32>
    %78 = arith.truncf %77 : vector<64x128xf32> to vector<64x128xbf16>
    %c0_71 = arith.constant 0 : index
    %c0_72 = arith.constant 0 : index
    %c0_73 = arith.constant 0 : index
    %79 = vector.load %arg6[%c0_71, %c0_72, %c0_73] : memref<2x128x192xbf16, #tpu.memory_space<vmem>>, vector<1x128x192xbf16>
    %80 = vector.shape_cast %79 : vector<1x128x192xbf16> to vector<128x192xbf16>
    %cst_74 = arith.constant dense<0.000000e+00> : vector<64x192xf32>
    %81 = tpu.matmul %78, %80, %cst_74 {dimension_numbers = #tpu.dot_dimension_numbers<[1], [0], [0], [1], [0, 0, 1, 1], [], []>} : vector<64x128xbf16>, vector<128x192xbf16>, vector<64x192xf32> -> vector<64x192xf32>
    %82 = arith.addf %74, %81 : vector<64x192xf32>
    %c1_75 = arith.constant 1 : index
    %c0_76 = arith.constant 0 : index
    %c0_77 = arith.constant 0 : index
    %83 = vector.load %arg7[%c1_75, %c0_76, %c0_77] : memref<2x64x32xbf16, #tpu.memory_space<vmem>>, vector<1x64x32xbf16>
    %84 = vector.shape_cast %83 : vector<1x64x32xbf16> to vector<64x32xbf16>
    %cst_78 = arith.constant dense<0.000000e+00> : vector<64x128xf32>
    %85 = tpu.matmul %84, %73, %cst_78 {dimension_numbers = #tpu.dot_dimension_numbers<[1], [0], [0], [1], [0, 0, 1, 1], [], []>} : vector<64x32xbf16>, vector<32x128xbf16>, vector<64x128xf32> -> vector<64x128xf32>
    %86 = arith.truncf %85 : vector<64x128xf32> to vector<64x128xbf16>
    %c1_79 = arith.constant 1 : index
    %c0_80 = arith.constant 0 : index
    %c0_81 = arith.constant 0 : index
    %87 = vector.load %arg6[%c1_79, %c0_80, %c0_81] : memref<2x128x192xbf16, #tpu.memory_space<vmem>>, vector<1x128x192xbf16>
    %88 = vector.shape_cast %87 : vector<1x128x192xbf16> to vector<128x192xbf16>
    %cst_82 = arith.constant dense<0.000000e+00> : vector<64x192xf32>
    %89 = tpu.matmul %86, %88, %cst_82 {dimension_numbers = #tpu.dot_dimension_numbers<[1], [0], [0], [1], [0, 0, 1, 1], [], []>} : vector<64x128xbf16>, vector<128x192xbf16>, vector<64x192xf32> -> vector<64x192xf32>
    %90 = arith.addf %82, %89 : vector<64x192xf32>
    %cst_83 = arith.constant 0.000000e+00 : f32
    %91 = vector.broadcast %cst_83 : f32 to vector<64x192xf32>
    %92 = arith.maximumf %90, %91 : vector<64x192xf32>
    %c0_84 = arith.constant 0 : index
    %c0_85 = arith.constant 0 : index
    %c0_86 = arith.constant 0 : index
    %93 = vector.load %arg8[%c0_84, %c0_85, %c0_86] : memref<1x64x192xf32, #tpu.memory_space<vmem>>, vector<1x64x192xf32>
    %94 = vector.shape_cast %93 : vector<1x64x192xf32> to vector<64x192xf32>
    %95 = vector.shape_cast %92 : vector<64x192xf32> to vector<1x64x192xf32>
    tpu.vector_store %arg8[%c0_84, %c0_85, %c0_86], %95 {strides = array<i32>} : memref<1x64x192xf32, #tpu.memory_space<vmem>>, vector<1x64x192xf32>,
    return
  }
  func.func @transform_0(%arg0: i32) -> (i32, i32, i32) {
    %c0_i32 = arith.constant 0 : i32
    %c0_i32_0 = arith.constant 0 : i32
    %c0_i32_1 = arith.constant 0 : i32
    return %arg0, %c0_i32, %c0_i32_0 : i32, i32, i32
  }
  func.func @transform_1(%arg0: i32) -> (i32, i32, i32) {
    %c0_i32 = arith.constant 0 : i32
    %c0_i32_0 = arith.constant 0 : i32
    %c0_i32_1 = arith.constant 0 : i32
    %c0_i32_2 = arith.constant 0 : i32
    return %c0_i32, %c0_i32_0, %c0_i32_1 : i32, i32, i32
  }
  func.func @transform_2(%arg0: i32) -> (i32, i32, i32) {
    %c0_i32 = arith.constant 0 : i32
    %c0_i32_0 = arith.constant 0 : i32
    %c0_i32_1 = arith.constant 0 : i32
    %c0_i32_2 = arith.constant 0 : i32
    return %c0_i32, %c0_i32_0, %c0_i32_1 : i32, i32, i32
  }
  func.func @transform_3(%arg0: i32) -> (i32, i32, i32) {
    %c0_i32 = arith.constant 0 : i32
    %c0_i32_0 = arith.constant 0 : i32
    %c0_i32_1 = arith.constant 0 : i32
    %c0_i32_2 = arith.constant 0 : i32
    return %c0_i32, %c0_i32_0, %c0_i32_1 : i32, i32, i32
  }
  func.func @transform_4(%arg0: i32) -> (i32, i32, i32) {
    %c0_i32 = arith.constant 0 : i32
    %c0_i32_0 = arith.constant 0 : i32
    %c0_i32_1 = arith.constant 0 : i32
    %c0_i32_2 = arith.constant 0 : i32
    return %c0_i32, %c0_i32_0, %c0_i32_1 : i32, i32, i32
  }
  func.func @transform_5(%arg0: i32) -> (i32, i32, i32) {
    %c0_i32 = arith.constant 0 : i32
    %c0_i32_0 = arith.constant 0 : i32
    %c0_i32_1 = arith.constant 0 : i32
    %c0_i32_2 = arith.constant 0 : i32
    return %c0_i32, %c0_i32_0, %c0_i32_1 : i32, i32, i32
  }
  func.func @transform_6(%arg0: i32) -> (i32, i32, i32) {
    %c0_i32 = arith.constant 0 : i32
    %c0_i32_0 = arith.constant 0 : i32
    %c0_i32_1 = arith.constant 0 : i32
    %c0_i32_2 = arith.constant 0 : i32
    return %c0_i32, %c0_i32_0, %c0_i32_1 : i32, i32, i32
  }
  func.func @transform_7(%arg0: i32) -> (i32, i32, i32) {
    %c0_i32 = arith.constant 0 : i32
    %c0_i32_0 = arith.constant 0 : i32
    %c0_i32_1 = arith.constant 0 : i32
    return %arg0, %c0_i32, %c0_i32_0 : i32, i32, i32
  }
}

</mosaic_0001>

<llo_original>
// kernel: gen_ecal_forward.1
$region0: #{gen_ecal_forward.1}
  #allocation0 [shape = 'u32[]', space=smem, size = 0x4, offset = 0x4, fixed_abs, tag = 'smem constant byte address 0x4 - core index']
  #allocation1 [shape = 'u32[144,128]{1,0:T(1,128)}', space=vmem, size = 0x12000, scoped, tag = 'internal scratch']
  %s0 = inlined_call_operand.vmem [shape: bf16[2,8,32], index: 0, kind: input, shape index: {}]
  %s1 = inlined_call_operand.vmem [shape: bf16[4,32,128], index: 1, kind: input, shape index: {}]
  %s2 = inlined_call_operand.vmem [shape: bf16[4,16,8], index: 2, kind: input, shape index: {}]
  %s3 = inlined_call_operand.vmem [shape: bf16[4,128,128], index: 3, kind: input, shape index: {}]
  %s4 = inlined_call_operand.vmem [shape: bf16[4,32,16], index: 4, kind: input, shape index: {}]
  %s5 = inlined_call_operand.vmem [shape: bf16[2,128,192], index: 5, kind: input, shape index: {}]
  %s6 = inlined_call_operand.vmem [shape: bf16[2,64,32], index: 6, kind: input, shape index: {}]
  %s7 = inlined_call_operand.vmem [shape: f32[2,64,192], index: 7, kind: output, shape index: {}]
  %s8 = sld [smem:[#allocation0]]
  $region61: #{gen_ecal_forward.1} parent=0
    _
  %s10 = ssub.s32 1, %s8
  %s11 = scalar_select 0, %s10, %s8
  loop: start=0, step=1, limit=4
  $region2: #{gen_ecal_forward.1} parent=0 // loop_pre_header
    _
  $region3: #{gen_ecal_forward.1} parent=0 // loop_header
    %s13 = sphi 0, %s17
    %p14 = scmp.ge.s32.totalorder %s13, 4
    %s23 = sphi 0, %s25
    %s26 = sphi 0, %s23
    %s27 = sphi 0, %s26
    %s43 = sphi 0, %s27
    %s47 = sphi 0, %s47
    %s49 = sphi 0, %s47
    %s50 = sphi 0, %s49
    %s64 = sphi 0, %s50
    %s68 = sphi 0, %s68
    %s70 = sphi 0, %s68
    %s71 = sphi 0, %s70
    %s85 = sphi 0, %s71
    %s89 = sphi 0, %s89
    %s91 = sphi 0, %s89
    %s92 = sphi 0, %s91
    %s106 = sphi 0, %s92
    %s110 = sphi 0, %s110
    %s112 = sphi 0, %s110
    %s113 = sphi 0, %s112
    %s127 = sphi 0, %s113
    %s131 = sphi 0, %s131
    %s133 = sphi 0, %s131
    %s134 = sphi 0, %s133
    %s148 = sphi 0, %s134
    %s152 = sphi 0, %s152
    %s154 = sphi 0, %s152
    %s155 = sphi 0, %s154
    %s169 = sphi 0, %s155
    %s175 = sphi 0, %s177
    %s178 = sphi 0, %s175
    %s179 = sphi 0, %s178
    %s195 = sphi 0, %s179
  $region4: #{gen_ecal_forward.1} parent=0 // loop_header_branch
    %16 = sbr.rel (%p14) target = $region8
  $region5: #{gen_ecal_forward.1} parent=0 // loop_body
    %s18 = ssub.s32 %s13, 1
    %s19 = ssub.s32 %s13, 2
    %s20 = sadd.s32 %s13, 1
    %s21 = ssub.s32 %s13, %s20
    %p22 = scmp.eq.s32.totalorder %s21, 0
    %s24 = sadd.s32 %s23, 1
    %s25 = scalar_select %p22, %s23, %s24
    %p28 = pneg %p22
    %p29 = scmp.eq.s32.totalorder %s13, 1
    %p30 = por %p28, %p29
    %p31 = scmp.ne.s32.totalorder %s23, %s26
    %p32 = scmp.eq.s32.totalorder %s13, 0
    %p33 = por %p31, %p32
    %p34 = scmp.ne.s32.totalorder %s23, %s26
    %p35 = scmp.eq.s32.totalorder %s18, 1
    %p36 = por %p34, %p35
    %p37 = scmp.ne.s32.totalorder %s26, %s27
    %p38 = scmp.eq.s32.totalorder %s18, 0
    %p39 = por %p37, %p38
    %p40 = scmp.ne.s32.totalorder %s26, %s27
    %p41 = scmp.eq.s32.totalorder %s19, 1
    %p42 = por %p40, %p41
    %p44 = scmp.ne.s32.totalorder %s27, %s43
    %p45 = scmp.eq.s32.totalorder %s19, 0
    %p46 = por %p44, %p45
    %s48 = sadd.s32 %s47, 1
    %p51 = scmp.eq.s32.totalorder %s13, 1
    %p52 = scmp.ne.s32.totalorder %s47, %s49
    %p53 = scmp.eq.s32.totalorder %s13, 0
    %p54 = por %p52, %p53
    %p55 = scmp.ne.s32.totalorder %s47, %s49
    %p56 = scmp.eq.s32.totalorder %s18, 1
    %p57 = por %p55, %p56
    %p58 = scmp.ne.s32.totalorder %s49, %s50
    %p59 = scmp.eq.s32.totalorder %s18, 0
    %p60 = por %p58, %p59
    %p61 = scmp.ne.s32.totalorder %s49, %s50
    %p62 = scmp.eq.s32.totalorder %s19, 1
    %p63 = por %p61, %p62
    %p65 = scmp.ne.s32.totalorder %s50, %s64
    %p66 = scmp.eq.s32.totalorder %s19, 0
    %p67 = por %p65, %p66
    %s69 = sadd.s32 %s68, 1
    %p72 = scmp.eq.s32.totalorder %s13, 1
    %p73 = scmp.ne.s32.totalorder %s68, %s70
    %p74 = scmp.eq.s32.totalorder %s13, 0
    %p75 = por %p73, %p74
    %p76 = scmp.ne.s32.totalorder %s68, %s70
    %p77 = scmp.eq.s32.totalorder %s18, 1
    %p78 = por %p76, %p77
    %p79 = scmp.ne.s32.totalorder %s70, %s71
    %p80 = scmp.eq.s32.totalorder %s18, 0
    %p81 = por %p79, %p80
    %p82 = scmp.ne.s32.totalorder %s70, %s71
    %p83 = scmp.eq.s32.totalorder %s19, 1
    %p84 = por %p82, %p83
    %p86 = scmp.ne.s32.totalorder %s71, %s85
    %p87 = scmp.eq.s32.totalorder %s19, 0
    %p88 = por %p86, %p87
    %s90 = sadd.s32 %s89, 1
    %p93 = scmp.eq.s32.totalorder %s13, 1
    %p94 = scmp.ne.s32.totalorder %s89, %s91
    %p95 = scmp.eq.s32.totalorder %s13, 0
    %p96 = por %p94, %p95
    %p97 = scmp.ne.s32.totalorder %s89, %s91
    %p98 = scmp.eq.s32.totalorder %s18, 1
    %p99 = por %p97, %p98
    %p100 = scmp.ne.s32.totalorder %s91, %s92
    %p101 = scmp.eq.s32.totalorder %s18, 0
    %p102 = por %p100, %p101
    %p103 = scmp.ne.s32.totalorder %s91, %s92
    %p104 = scmp.eq.s32.totalorder %s19, 1
    %p105 = por %p103, %p104
    %p107 = scmp.ne.s32.totalorder %s92, %s106
    %p108 = scmp.eq.s32.totalorder %s19, 0
    %p109 = por %p107, %p108
    %s111 = sadd.s32 %s110, 1
    %p114 = scmp.eq.s32.totalorder %s13, 1
    %p115 = scmp.ne.s32.totalorder %s110, %s112
    %p116 = scmp.eq.s32.totalorder %s13, 0
    %p117 = por %p115, %p116
    %p118 = scmp.ne.s32.totalorder %s110, %s112
    %p119 = scmp.eq.s32.totalorder %s18, 1
    %p120 = por %p118, %p119
    %p121 = scmp.ne.s32.totalorder %s112, %s113
    %p122 = scmp.eq.s32.totalorder %s18, 0
    %p123 = por %p121, %p122
    %p124 = scmp.ne.s32.totalorder %s112, %s113
    %p125 = scmp.eq.s32.totalorder %s19, 1
    %p126 = por %p124, %p125
    %p128 = scmp.ne.s32.totalorder %s113, %s127
    %p129 = scmp.eq.s32.totalorder %s19, 0
    %p130 = por %p128, %p129
    %s132 = sadd.s32 %s131, 1
    %p135 = scmp.eq.s32.totalorder %s13, 1
    %p136 = scmp.ne.s32.totalorder %s131, %s133
    %p137 = scmp.eq.s32.totalorder %s13, 0
    %p138 = por %p136, %p137
    %p139 = scmp.ne.s32.totalorder %s131, %s133
    %p140 = scmp.eq.s32.totalorder %s18, 1
    %p141 = por %p139, %p140
    %p142 = scmp.ne.s32.totalorder %s133, %s134
    %p143 = scmp.eq.s32.totalorder %s18, 0
    %p144 = por %p142, %p143
    %p145 = scmp.ne.s32.totalorder %s133, %s134
    %p146 = scmp.eq.s32.totalorder %s19, 1
    %p147 = por %p145, %p146
    %p149 = scmp.ne.s32.totalorder %s134, %s148
    %p150 = scmp.eq.s32.totalorder %s19, 0
    %p151 = por %p149, %p150
    %s153 = sadd.s32 %s152, 1
    %p156 = scmp.eq.s32.totalorder %s13, 1
    %p157 = scmp.ne.s32.totalorder %s152, %s154
    %p158 = scmp.eq.s32.totalorder %s13, 0
    %p159 = por %p157, %p158
    %p160 = scmp.ne.s32.totalorder %s152, %s154
    %p161 = scmp.eq.s32.totalorder %s18, 1
    %p162 = por %p160, %p161
    %p163 = scmp.ne.s32.totalorder %s154, %s155
    %p164 = scmp.eq.s32.totalorder %s18, 0
    %p165 = por %p163, %p164
    %p166 = scmp.ne.s32.totalorder %s154, %s155
    %p167 = scmp.eq.s32.totalorder %s19, 1
    %p168 = por %p166, %p167
    %p170 = scmp.ne.s32.totalorder %s155, %s169
    %p171 = scmp.eq.s32.totalorder %s19, 0
    %p172 = por %p170, %p171
    %s173 = ssub.s32 %s13, %s20
    %p174 = scmp.eq.s32.totalorder %s173, 0
    %s176 = sadd.s32 %s175, 1
    %s177 = scalar_select %p174, %s175, %s176
    %p180 = pneg %p174
    %p181 = scmp.eq.s32.totalorder %s13, 1
    %p182 = por %p180, %p181
    %p183 = scmp.ne.s32.totalorder %s175, %s178
    %p184 = scmp.eq.s32.totalorder %s13, 0
    %p185 = por %p183, %p184
    %p186 = scmp.ne.s32.totalorder %s175, %s178
    %p187 = scmp.eq.s32.totalorder %s18, 1
    %p188 = por %p186, %p187
    %p189 = scmp.ne.s32.totalorder %s178, %s179
    %p190 = scmp.eq.s32.totalorder %s18, 0
    %p191 = por %p189, %p190
    %p192 = scmp.ne.s32.totalorder %s178, %s179
    %p193 = scmp.eq.s32.totalorder %s19, 1
    %p194 = por %p192, %p193
    %p196 = scmp.ne.s32.totalorder %s179, %s195
    %p197 = scmp.eq.s32.totalorder %s19, 0
    %p198 = por %p196, %p197
    %p199 = scmp.le.s32.totalorder 1, %s13
    %p200 = scmp.lt.s32.totalorder %s13, 3
    %p201 = pnand %p199, %p200
    %p202 = pneg %p201
    // Predicated region
    $region9: #{gen_ecal_forward.1} parent=5 // pred_check
      _
    $region10: #{gen_ecal_forward.1} parent=5 // pred_check_branch
      %204 = sbr.rel (%p201) target = $region12
    $region11: #{gen_ecal_forward.1} parent=5 // pred_region
      %s205 = ssub.s32 %s13, 1
      // Predicated region
      $region13: #{gen_ecal_forward.1} parent=11 // pred_check
        %p206 = pneg %p60
      $region14: #{gen_ecal_forward.1} parent=11 // pred_check_branch
        %208 = sbr.rel (%p206) target = $region16
      $region15: #{gen_ecal_forward.1} parent=11 // pred_region
        _
      $region16: #{gen_ecal_forward.1} parent=11 // pred_fallthru
        _
      // Predicated region
      $region17: #{gen_ecal_forward.1} parent=11 // pred_check
        %p209 = pneg %p81
      $region18: #{gen_ecal_forward.1} parent=11 // pred_check_branch
        %211 = sbr.rel (%p209) target = $region20
      $region19: #{gen_ecal_forward.1} parent=11 // pred_region
        _
      $region20: #{gen_ecal_forward.1} parent=11 // pred_fallthru
        _
      // Predicated region
      $region21: #{gen_ecal_forward.1} parent=11 // pred_check
        %p212 = pneg %p102
      $region22: #{gen_ecal_forward.1} parent=11 // pred_check_branch
        %214 = sbr.rel (%p212) target = $region24
      $region23: #{gen_ecal_forward.1} parent=11 // pred_region
        _
      $region24: #{gen_ecal_forward.1} parent=11 // pred_fallthru
        _
      // Predicated region
      $region25: #{gen_ecal_forward.1} parent=11 // pred_check
        %p215 = pneg %p123
      $region26: #{gen_ecal_forward.1} parent=11 // pred_check_branch
        %217 = sbr.rel (%p215) target = $region28
      $region27: #{gen_ecal_forward.1} parent=11 // pred_region
        _
      $region28: #{gen_ecal_forward.1} parent=11 // pred_fallthru
        _
      // Predicated region
      $region29: #{gen_ecal_forward.1} parent=11 // pred_check
        %p218 = pneg %p144
      $region30: #{gen_ecal_forward.1} parent=11 // pred_check_branch
        %220 = sbr.rel (%p218) target = $region32
      $region31: #{gen_ecal_forward.1} parent=11 // pred_region
        _
      $region32: #{gen_ecal_forward.1} parent=11 // pred_fallthru
        _
      // Predicated region
      $region33: #{gen_ecal_forward.1} parent=11 // pred_check
        %p221 = pneg %p165
      $region34: #{gen_ecal_forward.1} parent=11 // pred_check_branch
        %223 = sbr.rel (%p221) target = $region36
      $region35: #{gen_ecal_forward.1} parent=11 // pred_region
        _
      $region36: #{gen_ecal_forward.1} parent=11 // pred_fallthru
        _
    $region12: #{gen_ecal_forward.1} parent=5 // pred_fallthru
      _
    %p224 = scmp.lt.s32.totalorder %s13, 2
    // Predicated region
    $region37: #{gen_ecal_forward.1} parent=5 // pred_check
      %p225 = pneg %p224
    $region38: #{gen_ecal_forward.1} parent=5 // pred_check_branch
      %227 = sbr.rel (%p225) target = $region40
    $region39: #{gen_ecal_forward.1} parent=5 // pred_region
      // Predicated region
      $region41: #{gen_ecal_forward.1} parent=39 // pred_check
        %p228 = pneg %p33
      $region42: #{gen_ecal_forward.1} parent=39 // pred_check_branch
        %230 = sbr.rel (%p228) target = $region44
      $region43: #{gen_ecal_forward.1} parent=39 // pred_region
        %p231 = scmp.lt.s32.totalorder %s13, 1
        %s232 = scalar_select %p231, %s13, 1
        %s233 = smul.addr %s232, 4
        %s234 = scalar_lea.vmem %s0, %s233
      $region44: #{gen_ecal_forward.1} parent=39 // pred_fallthru
        _
    $region40: #{gen_ecal_forward.1} parent=5 // pred_fallthru
      _
    %p235 = scmp.le.s32.totalorder 1, %s13
    %p236 = scmp.lt.s32.totalorder %s13, 3
    %p237 = pnand %p235, %p236
    %p238 = pneg %p237
    // Predicated region
    $region45: #{gen_ecal_forward.1} parent=5 // pred_check
      _
    $region46: #{gen_ecal_forward.1} parent=5 // pred_check_branch
      %240 = sbr.rel (%p237) target = $region48
    $region47: #{gen_ecal_forward.1} parent=5 // pred_region
      %s241 = ssub.s32 %s13, 1
      %p242 = scmp.lt.s32.totalorder %s18, 1
      %s243 = scalar_select %p242, %s18, 1
      %s244 = smul.addr %s243, 4
      %s245 = scalar_lea.vmem %s0, %s244
      %p246 = pneg %p39
      %p247 = pneg %p36
      %p248 = pneg %p60
      %p249 = pneg %p57
      %p250 = pneg %p81
      %p251 = pneg %p78
      %p252 = pneg %p102
      %p253 = pneg %p99
      %p254 = pneg %p123
      %p255 = pneg %p120
      %p256 = pneg %p144
      %p257 = pneg %p141
      %p258 = pneg %p165
      %p259 = pneg %p162
      %p260 = pneg %p191
      %p261 = pneg %p188
      %p262 = scmp.lt.s32.totalorder %s18, 1
      %s263 = scalar_select %p262, %s18, 1
      %s264 = smul.addr %s263, 16
      %s265 = smul.addr %s264, 8
      %s266 = scalar_lea.vmem %s7, %s265
      %p267 = scmp.lt.s32.totalorder %s18, 1
      %s268 = scalar_select %p267, %s18, 1
      %s269 = smul.addr %s268, 4
      %s270 = scalar_lea.vmem %s0, %s269
      %p271 = scmp.lt.s32.totalorder %s18, 1
      %s272 = scalar_select %p271, %s18, 1
      %s273 = smul.addr %s272, 16
      %s274 = smul.addr %s273, 8
      %s275 = scalar_lea.vmem %s7, %s274
      %v277 = vld [vmem:[%s270] sm:$0xf]
      %v278 = vld [vmem:[%s2] sm:$0xf]
      %v279 = vld [vmem:[%s2 + $0x4] sm:$0xf]
      %v282 = vunpack.c.l.b16 %v278
      %v283 = vunpack.c.l.b16 %v279
      %v284 = vpack.c.b16 %v283, %v282
      %vm285 = vcmask 64512
      %v287 = vsel %vm285, %v284, 0
      %vm289 = vcmask 1043456
      %v291 = vsel %vm289, %v277, 0
      %293 = vmatprep.subr.bf16.mxu0 0
      %294 = vmatpush1.bf16.msra.mxu0 0
      %295 = vmatprep.subr.bf16.mxu0 0
      %296 = vmatpush1.bf16.msra.mxu0 0
      %297 = vmatprep.subr.bf16.mxu0 0
      %298 = vmatpush1.bf16.msra.mxu0 0
      %299 = vmatprep.subr.bf16.mxu0 0
      %300 = vmatpush1.bf16.msra.mxu0 0
      %301 = vmatprep.subr.bf16.mxu0 0
      %302 = vmatpush1.bf16.msra.mxu0 0
      %303 = vmatprep.subr.bf16.mxu0 0
      %304 = vmatpush1.bf16.msra.mxu0 0
      %305 = vmatprep.subr.bf16.mxu0 0
      %306 = vmatpush1.bf16.msra.mxu0 0
      %307 = vmatprep.subr.bf16.mxu0 0
      %308 = vmatpush1.bf16.msra.mxu0 %v291
      %309 = vmatprep.subr.bf16.mxu0 0
      %310 = vmatpush2.bf16.msra.mxu0 0
      %311 = vmatprep.subr.bf16.mxu0 0
      %312 = vmatpush2.bf16.msra.mxu0 0
      %313 = vmatprep.subr.bf16.mxu0 0
      %314 = vmatpush2.bf16.msra.mxu0 0
      %315 = vmatprep.subr.bf16.mxu0 0
      %316 = vmatpush2.bf16.msra.mxu0 0
      %317 = vmatprep.subr.bf16.mxu0 0
      %318 = vmatpush2.bf16.msra.mxu0 0
      %319 = vmatprep.subr.bf16.mxu0 0
      %320 = vmatpush2.bf16.msra.mxu0 0
      %321 = vmatprep.subr.bf16.mxu0 0
      %322 = vmatpush2.bf16.msra.mxu0 0
      %323 = vmatprep.subr.bf16.mxu0 0
      %324 = vmatpush2.bf16.msra.mxu0 0
      %325 = vmatprep.mubr.bf16.mxu0 0
      %326 = vmatmul.mubr.bf16.gmra.mxu0 %v287
      %v327 = vpop.f32.mrf.mxu0
      %v328 = vadd.f32 0.0, %v327
      %v329 = vpop.f32.mrf.mxu0
      %v330 = vpop.f32.mrf.mxu0
      %v331 = vadd.f32 0.0, %v330
      %v332 = vpop.f32.mrf.mxu0
      %333 = vdwg.mxu0
      %v334 = vpack.c.bf16 %v331, %v328
      %v335 = vld [vmem:[%s1] sm:$0xf]
      %v336 = vld [vmem:[%s1 + $0x4] sm:$0xf]
      %v337 = vld [vmem:[%s1 + $0x8] sm:$0xf]
      %v338 = vld [vmem:[%s1 + $0xc] sm:$0xf]
      %s339 = scalar_lea.vmem %s2, 8
      %v340 = vld [vmem:[%s339] sm:$0xf]
      %v341 = vld [vmem:[%s339 + $0x4] sm:$0xf]
      %v344 = vunpack.c.l.b16 %v340
      %v345 = vunpack.c.l.b16 %v341
      %v346 = vpack.c.b16 %v345, %v344
      %v348 = vsel %vm285, %v346, 0
      %350 = vmatprep.subr.bf16.mxu0 0
      %351 = vmatpush1.bf16.msra.mxu0 0
      %352 = vmatprep.subr.bf16.mxu0 0
      %353 = vmatpush1.bf16.msra.mxu0 0
      %354 = vmatprep.subr.bf16.mxu0 0
      %355 = vmatpush1.bf16.msra.mxu0 0
      %356 = vmatprep.subr.bf16.mxu0 0
      %357 = vmatpush1.bf16.msra.mxu0 0
      %358 = vmatprep.subr.bf16.mxu0 0
      %359 = vmatpush1.bf16.msra.mxu0 0
      %360 = vmatprep.subr.bf16.mxu0 0
      %361 = vmatpush1.bf16.msra.mxu0 0
      %362 = vmatprep.subr.bf16.mxu0 0
      %363 = vmatpush1.bf16.msra.mxu0 0
      %364 = vmatprep.subr.bf16.mxu0 0
      %365 = vmatpush1.bf16.msra.mxu0 %v291
      %366 = vmatprep.subr.bf16.mxu0 0
      %367 = vmatpush2.bf16.msra.mxu0 0
      %368 = vmatprep.subr.bf16.mxu0 0
      %369 = vmatpush2.bf16.msra.mxu0 0
      %370 = vmatprep.subr.bf16.mxu0 0
      %371 = vmatpush2.bf16.msra.mxu0 0
      %372 = vmatprep.subr.bf16.mxu0 0
      %373 = vmatpush2.bf16.msra.mxu0 0
      %374 = vmatprep.subr.bf16.mxu0 0
      %375 = vmatpush2.bf16.msra.mxu0 0
      %376 = vmatprep.subr.bf16.mxu0 0
      %377 = vmatpush2.bf16.msra.mxu0 0
      %378 = vmatprep.subr.bf16.mxu0 0
      %379 = vmatpush2.bf16.msra.mxu0 0
      %380 = vmatprep.subr.bf16.mxu0 0
      %381 = vmatpush2.bf16.msra.mxu0 0
      %382 = vmatprep.mubr.bf16.mxu0 0
      %383 = vmatmul.mubr.bf16.gmra.mxu0 %v348
      %v384 = vpop.f32.mrf.mxu0
      %v385 = vadd.f32 0.0, %v384
      %v386 = vpop.f32.mrf.mxu0
      %v387 = vpop.f32.mrf.mxu0
      %v388 = vadd.f32 0.0, %v387
      %v389 = vpop.f32.mrf.mxu0
      %390 = vdwg.mxu0
      %v391 = vpack.c.bf16 %v388, %v385
      %s392 = scalar_lea.vmem %s1, 16
      %v393 = vld [vmem:[%s392] sm:$0xf]
      %v394 = vld [vmem:[%s392 + $0x4] sm:$0xf]
      %v395 = vld [vmem:[%s392 + $0x8] sm:$0xf]
      %v396 = vld [vmem:[%s392 + $0xc] sm:$0xf]
      %v401 = vunpack.c.l.b16 %v393
      %v402 = vunpack.c.l.b16 %v394
      %v403 = vunpack.c.l.b16 %v395
      %v404 = vunpack.c.l.b16 %v396
      %v405 = vpack.c.b16 %v402, %v401
      %v406 = vpack.c.b16 %v404, %v403
      %vm409 = vcmask 261120
      %v411 = vsel %vm409, %v391, 0
      %413 = vmatprep.subr.bf16.mxu0 0
      %414 = vmatpush1.bf16.msra.mxu0 0
      %415 = vmatprep.subr.bf16.mxu0 0
      %416 = vmatpush1.bf16.msra.mxu0 0
      %417 = vmatprep.subr.bf16.mxu0 0
      %418 = vmatpush1.bf16.msra.mxu0 0
      %419 = vmatprep.subr.bf16.mxu0 0
      %420 = vmatpush1.bf16.msra.mxu0 0
      %421 = vmatprep.subr.bf16.mxu0 0
      %422 = vmatpush1.bf16.msra.mxu0 0
      %423 = vmatprep.subr.bf16.mxu0 0
      %424 = vmatpush1.bf16.msra.mxu0 0
      %425 = vmatprep.subr.bf16.mxu0 0
      %426 = vmatpush1.bf16.msra.mxu0 %v406
      %427 = vmatprep.subr.bf16.mxu0 0
      %428 = vmatpush1.bf16.msra.mxu0 %v405
      %429 = vmatprep.subr.bf16.mxu0 0
      %430 = vmatpush2.bf16.msra.mxu0 0
      %431 = vmatprep.subr.bf16.mxu0 0
      %432 = vmatpush2.bf16.msra.mxu0 0
      %433 = vmatprep.subr.bf16.mxu0 0
      %434 = vmatpush2.bf16.msra.mxu0 0
      %435 = vmatprep.subr.bf16.mxu0 0
      %436 = vmatpush2.bf16.msra.mxu0 0
      %437 = vmatprep.subr.bf16.mxu0 0
      %438 = vmatpush2.bf16.msra.mxu0 0
      %439 = vmatprep.subr.bf16.mxu0 0
      %440 = vmatpush2.bf16.msra.mxu0 0
      %441 = vmatprep.subr.bf16.mxu0 0
      %442 = vmatpush2.bf16.msra.mxu0 0
      %443 = vmatprep.subr.bf16.mxu0 0
      %444 = vmatpush2.bf16.msra.mxu0 0
      %445 = vmatprep.mubr.bf16.mxu0 0
      %446 = vmatmul.mubr.bf16.gmra.mxu0 %v411
      %v447 = vpop.f32.mrf.mxu0
      %v448 = vadd.f32 0.0, %v447
      %v449 = vpop.f32.mrf.mxu0
      %v450 = vpop.f32.mrf.mxu0
      %v451 = vadd.f32 0.0, %v450
      %v452 = vpop.f32.mrf.mxu0
      %453 = vdwg.mxu0
      %v458 = vunpack.c.l.b16 %v335
      %v459 = vunpack.c.l.b16 %v336
      %v460 = vunpack.c.l.b16 %v337
      %v461 = vunpack.c.l.b16 %v338
      %v462 = vpack.c.b16 %v459, %v458
      %v463 = vpack.c.b16 %v461, %v460
      %v467 = vsel %vm409, %v334, 0
      %469 = vmatprep.subr.bf16.mxu0 0
      %470 = vmatpush1.bf16.msra.mxu0 0
      %471 = vmatprep.subr.bf16.mxu0 0
      %472 = vmatpush1.bf16.msra.mxu0 0
      %473 = vmatprep.subr.bf16.mxu0 0
      %474 = vmatpush1.bf16.msra.mxu0 0
      %475 = vmatprep.subr.bf16.mxu0 0
      %476 = vmatpush1.bf16.msra.mxu0 0
      %477 = vmatprep.subr.bf16.mxu0 0
      %478 = vmatpush1.bf16.msra.mxu0 0
      %479 = vmatprep.subr.bf16.mxu0 0
      %480 = vmatpush1.bf16.msra.mxu0 0
      %481 = vmatprep.subr.bf16.mxu0 0
      %482 = vmatpush1.bf16.msra.mxu0 %v463
      %483 = vmatprep.subr.bf16.mxu0 0
      %484 = vmatpush1.bf16.msra.mxu0 %v462
      %485 = vmatprep.subr.bf16.mxu0 0
      %486 = vmatpush2.bf16.msra.mxu0 0
      %487 = vmatprep.subr.bf16.mxu0 0
      %488 = vmatpush2.bf16.msra.mxu0 0
      %489 = vmatprep.subr.bf16.mxu0 0
      %490 = vmatpush2.bf16.msra.mxu0 0
      %491 = vmatprep.subr.bf16.mxu0 0
      %492 = vmatpush2.bf16.msra.mxu0 0
      %493 = vmatprep.subr.bf16.mxu0 0
      %494 = vmatpush2.bf16.msra.mxu0 0
      %495 = vmatprep.subr.bf16.mxu0 0
      %496 = vmatpush2.bf16.msra.mxu0 0
      %497 = vmatprep.subr.bf16.mxu0 0
      %498 = vmatpush2.bf16.msra.mxu0 0
      %499 = vmatprep.subr.bf16.mxu0 0
      %500 = vmatpush2.bf16.msra.mxu0 0
      %501 = vmatprep.mubr.bf16.mxu0 0
      %502 = vmatmul.mubr.bf16.gmra.mxu0 %v467
      %v503 = vpop.f32.mrf.mxu0
      %v504 = vadd.f32 %v448, %v503
      %v505 = vpop.f32.mrf.mxu0
      %v506 = vpop.f32.mrf.mxu0
      %v507 = vadd.f32 %v451, %v506
      %v508 = vpop.f32.mrf.mxu0
      %509 = vdwg.mxu0
      %s510 = scalar_lea.vmem %s2, 16
      %v511 = vld [vmem:[%s510] sm:$0xf]
      %v512 = vld [vmem:[%s510 + $0x4] sm:$0xf]
      %v515 = vunpack.c.l.b16 %v511
      %v516 = vunpack.c.l.b16 %v512
      %v517 = vpack.c.b16 %v516, %v515
      %v519 = vsel %vm285, %v517, 0
      %521 = vmatprep.subr.bf16.mxu0 0
      %522 = vmatpush1.bf16.msra.mxu0 0
      %523 = vmatprep.subr.bf16.mxu0 0
      %524 = vmatpush1.bf16.msra.mxu0 0
      %525 = vmatprep.subr.bf16.mxu0 0
      %526 = vmatpush1.bf16.msra.mxu0 0
      %527 = vmatprep.subr.bf16.mxu0 0
      %528 = vmatpush1.bf16.msra.mxu0 0
      %529 = vmatprep.subr.bf16.mxu0 0
      %530 = vmatpush1.bf16.msra.mxu0 0
      %531 = vmatprep.subr.bf16.mxu0 0
      %532 = vmatpush1.bf16.msra.mxu0 0
      %533 = vmatprep.subr.bf16.mxu0 0
      %534 = vmatpush1.bf16.msra.mxu0 0
      %535 = vmatprep.subr.bf16.mxu0 0
      %536 = vmatpush1.bf16.msra.mxu0 %v291
      %537 = vmatprep.subr.bf16.mxu0 0
      %538 = vmatpush2.bf16.msra.mxu0 0
      %539 = vmatprep.subr.bf16.mxu0 0
      %540 = vmatpush2.bf16.msra.mxu0 0
      %541 = vmatprep.subr.bf16.mxu0 0
      %542 = vmatpush2.bf16.msra.mxu0 0
      %543 = vmatprep.subr.bf16.mxu0 0
      %544 = vmatpush2.bf16.msra.mxu0 0
      %545 = vmatprep.subr.bf16.mxu0 0
      %546 = vmatpush2.bf16.msra.mxu0 0
      %547 = vmatprep.subr.bf16.mxu0 0
      %548 = vmatpush2.bf16.msra.mxu0 0
      %549 = vmatprep.subr.bf16.mxu0 0
      %550 = vmatpush2.bf16.msra.mxu0 0
      %551 = vmatprep.subr.bf16.mxu0 0
      %552 = vmatpush2.bf16.msra.mxu0 0
      %553 = vmatprep.mubr.bf16.mxu0 0
      %554 = vmatmul.mubr.bf16.gmra.mxu0 %v519
      %v555 = vpop.f32.mrf.mxu0
      %v556 = vadd.f32 0.0, %v555
      %v557 = vpop.f32.mrf.mxu0
      %v558 = vpop.f32.mrf.mxu0
      %v559 = vadd.f32 0.0, %v558
      %v560 = vpop.f32.mrf.mxu0
      %561 = vdwg.mxu0
      %v562 = vpack.c.bf16 %v559, %v556
      %s563 = scalar_lea.vmem %s1, 32
      %v564 = vld [vmem:[%s563] sm:$0xf]
      %v565 = vld [vmem:[%s563 + $0x4] sm:$0xf]
      %v566 = vld [vmem:[%s563 + $0x8] sm:$0xf]
      %v567 = vld [vmem:[%s563 + $0xc] sm:$0xf]
      %v572 = vunpack.c.l.b16 %v564
      %v573 = vunpack.c.l.b16 %v565
      %v574 = vunpack.c.l.b16 %v566
      %v575 = vunpack.c.l.b16 %v567
      %v576 = vpack.c.b16 %v573, %v572
      %v577 = vpack.c.b16 %v575, %v574
      %v581 = vsel %vm409, %v562, 0
      %583 = vmatprep.subr.bf16.mxu0 0
      %584 = vmatpush1.bf16.msra.mxu0 0
      %585 = vmatprep.subr.bf16.mxu0 0
      %586 = vmatpush1.bf16.msra.mxu0 0
      %587 = vmatprep.subr.bf16.mxu0 0
      %588 = vmatpush1.bf16.msra.mxu0 0
      %589 = vmatprep.subr.bf16.mxu0 0
      %590 = vmatpush1.bf16.msra.mxu0 0
      %591 = vmatprep.subr.bf16.mxu0 0
      %592 = vmatpush1.bf16.msra.mxu0 0
      %593 = vmatprep.subr.bf16.mxu0 0
      %594 = vmatpush1.bf16.msra.mxu0 0
      %595 = vmatprep.subr.bf16.mxu0 0
      %596 = vmatpush1.bf16.msra.mxu0 %v577
      %597 = vmatprep.subr.bf16.mxu0 0
      %598 = vmatpush1.bf16.msra.mxu0 %v576
      %599 = vmatprep.subr.bf16.mxu0 0
      %600 = vmatpush2.bf16.msra.mxu0 0
      %601 = vmatprep.subr.bf16.mxu0 0
      %602 = vmatpush2.bf16.msra.mxu0 0
      %603 = vmatprep.subr.bf16.mxu0 0
      %604 = vmatpush2.bf16.msra.mxu0 0
      %605 = vmatprep.subr.bf16.mxu0 0
      %606 = vmatpush2.bf16.msra.mxu0 0
      %607 = vmatprep.subr.bf16.mxu0 0
      %608 = vmatpush2.bf16.msra.mxu0 0
      %609 = vmatprep.subr.bf16.mxu0 0
      %610 = vmatpush2.bf16.msra.mxu0 0
      %611 = vmatprep.subr.bf16.mxu0 0
      %612 = vmatpush2.bf16.msra.mxu0 0
      %613 = vmatprep.subr.bf16.mxu0 0
      %614 = vmatpush2.bf16.msra.mxu0 0
      %615 = vmatprep.mubr.bf16.mxu0 0
      %616 = vmatmul.mubr.bf16.gmra.mxu0 %v581
      %v617 = vpop.f32.mrf.mxu0
      %v618 = vadd.f32 0.0, %v617
      %v619 = vpop.f32.mrf.mxu0
      %v620 = vpop.f32.mrf.mxu0
      %v621 = vadd.f32 0.0, %v620
      %v622 = vpop.f32.mrf.mxu0
      %623 = vdwg.mxu0
      %v624 = vadd.f32 %v504, %v618
      %v625 = vadd.f32 %v507, %v621
      %s626 = scalar_lea.vmem %s2, 24
      %v627 = vld [vmem:[%s626] sm:$0xf]
      %v628 = vld [vmem:[%s626 + $0x4] sm:$0xf]
      %v631 = vunpack.c.l.b16 %v627
      %v632 = vunpack.c.l.b16 %v628
      %v633 = vpack.c.b16 %v632, %v631
      %v635 = vsel %vm285, %v633, 0
      %637 = vmatprep.subr.bf16.mxu0 0
      %638 = vmatpush1.bf16.msra.mxu0 0
      %639 = vmatprep.subr.bf16.mxu0 0
      %640 = vmatpush1.bf16.msra.mxu0 0
      %641 = vmatprep.subr.bf16.mxu0 0
      %642 = vmatpush1.bf16.msra.mxu0 0
      %643 = vmatprep.subr.bf16.mxu0 0
      %644 = vmatpush1.bf16.msra.mxu0 0
      %645 = vmatprep.subr.bf16.mxu0 0
      %646 = vmatpush1.bf16.msra.mxu0 0
      %647 = vmatprep.subr.bf16.mxu0 0
      %648 = vmatpush1.bf16.msra.mxu0 0
      %649 = vmatprep.subr.bf16.mxu0 0
      %650 = vmatpush1.bf16.msra.mxu0 0
      %651 = vmatprep.subr.bf16.mxu0 0
      %652 = vmatpush1.bf16.msra.mxu0 %v291
      %653 = vmatprep.subr.bf16.mxu0 0
      %654 = vmatpush2.bf16.msra.mxu0 0
      %655 = vmatprep.subr.bf16.mxu0 0
      %656 = vmatpush2.bf16.msra.mxu0 0
      %657 = vmatprep.subr.bf16.mxu0 0
      %658 = vmatpush2.bf16.msra.mxu0 0
      %659 = vmatprep.subr.bf16.mxu0 0
      %660 = vmatpush2.bf16.msra.mxu0 0
      %661 = vmatprep.subr.bf16.mxu0 0
      %662 = vmatpush2.bf16.msra.mxu0 0
      %663 = vmatprep.subr.bf16.mxu0 0
      %664 = vmatpush2.bf16.msra.mxu0 0
      %665 = vmatprep.subr.bf16.mxu0 0
      %666 = vmatpush2.bf16.msra.mxu0 0
      %667 = vmatprep.subr.bf16.mxu0 0
      %668 = vmatpush2.bf16.msra.mxu0 0
      %669 = vmatprep.mubr.bf16.mxu0 0
      %670 = vmatmul.mubr.bf16.gmra.mxu0 %v635
      %v671 = vpop.f32.mrf.mxu0
      %v672 = vadd.f32 0.0, %v671
      %v673 = vpop.f32.mrf.mxu0
      %v674 = vpop.f32.mrf.mxu0
      %v675 = vadd.f32 0.0, %v674
      %v676 = vpop.f32.mrf.mxu0
      %677 = vdwg.mxu0
      %v678 = vpack.c.bf16 %v675, %v672
      %s679 = scalar_lea.vmem %s1, 48
      %v680 = vld [vmem:[%s679] sm:$0xf]
      %v681 = vld [vmem:[%s679 + $0x4] sm:$0xf]
      %v682 = vld [vmem:[%s679 + $0x8] sm:$0xf]
      %v683 = vld [vmem:[%s679 + $0xc] sm:$0xf]
      %v688 = vunpack.c.l.b16 %v680
      %v689 = vunpack.c.l.b16 %v681
      %v690 = vunpack.c.l.b16 %v682
      %v691 = vunpack.c.l.b16 %v683
      %v692 = vpack.c.b16 %v689, %v688
      %v693 = vpack.c.b16 %v691, %v690
      %v697 = vsel %vm409, %v678, 0
      %699 = vmatprep.subr.bf16.mxu0 0
      %700 = vmatpush1.bf16.msra.mxu0 0
      %701 = vmatprep.subr.bf16.mxu0 0
      %702 = vmatpush1.bf16.msra.mxu0 0
      %703 = vmatprep.subr.bf16.mxu0 0
      %704 = vmatpush1.bf16.msra.mxu0 0
      %705 = vmatprep.subr.bf16.mxu0 0
      %706 = vmatpush1.bf16.msra.mxu0 0
      %707 = vmatprep.subr.bf16.mxu0 0
      %708 = vmatpush1.bf16.msra.mxu0 0
      %709 = vmatprep.subr.bf16.mxu0 0
      %710 = vmatpush1.bf16.msra.mxu0 0
      %711 = vmatprep.subr.bf16.mxu0 0
      %712 = vmatpush1.bf16.msra.mxu0 %v693
      %713 = vmatprep.subr.bf16.mxu0 0
      %714 = vmatpush1.bf16.msra.mxu0 %v692
      %715 = vmatprep.subr.bf16.mxu0 0
      %716 = vmatpush2.bf16.msra.mxu0 0
      %717 = vmatprep.subr.bf16.mxu0 0
      %718 = vmatpush2.bf16.msra.mxu0 0
      %719 = vmatprep.subr.bf16.mxu0 0
      %720 = vmatpush2.bf16.msra.mxu0 0
      %721 = vmatprep.subr.bf16.mxu0 0
      %722 = vmatpush2.bf16.msra.mxu0 0
      %723 = vmatprep.subr.bf16.mxu0 0
      %724 = vmatpush2.bf16.msra.mxu0 0
      %725 = vmatprep.subr.bf16.mxu0 0
      %726 = vmatpush2.bf16.msra.mxu0 0
      %727 = vmatprep.subr.bf16.mxu0 0
      %728 = vmatpush2.bf16.msra.mxu0 0
      %729 = vmatprep.subr.bf16.mxu0 0
      %730 = vmatpush2.bf16.msra.mxu0 0
      %731 = vmatprep.mubr.bf16.mxu0 0
      %732 = vmatmul.mubr.bf16.gmra.mxu0 %v697
      %v733 = vpop.f32.mrf.mxu0
      %v734 = vadd.f32 0.0, %v733
      %v735 = vpop.f32.mrf.mxu0
      %v736 = vpop.f32.mrf.mxu0
      %v737 = vadd.f32 0.0, %v736
      %v738 = vpop.f32.mrf.mxu0
      %739 = vdwg.mxu0
      %v740 = vadd.f32 %v624, %v734
      %v741 = vadd.f32 %v625, %v737
      %v742 = vmax.f32 %v740, 0.0
      %v743 = vmax.f32 %v741, 0.0
      %v744 = vpack.c.bf16 %v743, %v742
      %v745 = vld [vmem:[%s4] sm:$0xf]
      %v746 = vld [vmem:[%s4 + $0x4] sm:$0xf]
      %v747 = vld [vmem:[%s4 + $0x8] sm:$0xf]
      %v748 = vld [vmem:[%s4 + $0xc] sm:$0xf]
      %v753 = vunpack.c.l.b16 %v745
      %v754 = vunpack.c.l.b16 %v746
      %v755 = vunpack.c.l.b16 %v747
      %v756 = vunpack.c.l.b16 %v748
      %v757 = vpack.c.b16 %v754, %v753
      %v758 = vpack.c.b16 %v756, %v755
      %vm759 = vcmask 130048
      %v761 = vsel %vm759, %v757, 0
      %v764 = vsel %vm759, %v758, 0
      %766 = vmatprep.subr.bf16.mxu0 0
      %767 = vmatpush1.bf16.msra.mxu0 0
      %768 = vmatprep.subr.bf16.mxu0 0
      %769 = vmatpush1.bf16.msra.mxu0 0
      %770 = vmatprep.subr.bf16.mxu0 0
      %771 = vmatpush1.bf16.msra.mxu0 0
      %772 = vmatprep.subr.bf16.mxu0 0
      %773 = vmatpush1.bf16.msra.mxu0 0
      %774 = vmatprep.subr.bf16.mxu0 0
      %775 = vmatpush1.bf16.msra.mxu0 0
      %776 = vmatprep.subr.bf16.mxu0 0
      %777 = vmatpush1.bf16.msra.mxu0 0
      %778 = vmatprep.subr.bf16.mxu0 0
      %779 = vmatpush1.bf16.msra.mxu0 0
      %780 = vmatprep.subr.bf16.mxu0 0
      %781 = vmatpush1.bf16.msra.mxu0 %v744
      %782 = vmatprep.subr.bf16.mxu0 0
      %783 = vmatpush2.bf16.msra.mxu0 0
      %784 = vmatprep.subr.bf16.mxu0 0
      %785 = vmatpush2.bf16.msra.mxu0 0
      %786 = vmatprep.subr.bf16.mxu0 0
      %787 = vmatpush2.bf16.msra.mxu0 0
      %788 = vmatprep.subr.bf16.mxu0 0
      %789 = vmatpush2.bf16.msra.mxu0 0
      %790 = vmatprep.subr.bf16.mxu0 0
      %791 = vmatpush2.bf16.msra.mxu0 0
      %792 = vmatprep.subr.bf16.mxu0 0
      %793 = vmatpush2.bf16.msra.mxu0 0
      %794 = vmatprep.subr.bf16.mxu0 0
      %795 = vmatpush2.bf16.msra.mxu0 0
      %796 = vmatprep.subr.bf16.mxu0 0
      %797 = vmatpush2.bf16.msra.mxu0 0
      %798 = vmatprep.mubr.bf16.mxu0 0
      %799 = vmatmul.mubr.bf16.gmra.mxu0 %v761
      %v800 = vpop.f32.mrf.mxu0
      %v801 = vadd.f32 0.0, %v800
      %v802 = vpop.f32.mrf.mxu0
      %v803 = vpop.f32.mrf.mxu0
      %v804 = vadd.f32 0.0, %v803
      %v805 = vpop.f32.mrf.mxu0
      %806 = vmatprep.mubr.bf16.mxu0 0
      %807 = vmatmul.mubr.bf16.gmra.mxu0 %v764
      %v808 = vpop.f32.mrf.mxu0
      %v809 = vadd.f32 0.0, %v808
      %v810 = vpop.f32.mrf.mxu0
      %v811 = vpop.f32.mrf.mxu0
      %v812 = vadd.f32 0.0, %v811
      %v813 = vpop.f32.mrf.mxu0
      %814 = vdwg.mxu0
      %v815 = vpack.c.bf16 %v804, %v801
      %v816 = vpack.c.bf16 %v812, %v809
      %v817 = vld [vmem:[%s3] sm:$0xf]
      %v818 = vld [vmem:[%s3 + $0x4] sm:$0xf]
      %v819 = vld [vmem:[%s3 + $0x8] sm:$0xf]
      %v820 = vld [vmem:[%s3 + $0xc] sm:$0xf]
      %v821 = vld [vmem:[%s3 + $0x10] sm:$0xf]
      %v822 = vld [vmem:[%s3 + $0x14] sm:$0xf]
      %v823 = vld [vmem:[%s3 + $0x18] sm:$0xf]
      %v824 = vld [vmem:[%s3 + $0x1c] sm:$0xf]
      %v825 = vld [vmem:[%s3 + $0x20] sm:$0xf]
      %v826 = vld [vmem:[%s3 + $0x24] sm:$0xf]
      %v827 = vld [vmem:[%s3 + $0x28] sm:$0xf]
      %v828 = vld [vmem:[%s3 + $0x2c] sm:$0xf]
      %v829 = vld [vmem:[%s3 + $0x30] sm:$0xf]
      %v830 = vld [vmem:[%s3 + $0x34] sm:$0xf]
      %v831 = vld [vmem:[%s3 + $0x38] sm:$0xf]
      %v832 = vld [vmem:[%s3 + $0x3c] sm:$0xf]
      %s833 = scalar_lea.vmem %s4, 16
      %v834 = vld [vmem:[%s833] sm:$0xf]
      %v835 = vld [vmem:[%s833 + $0x4] sm:$0xf]
      %v836 = vld [vmem:[%s833 + $0x8] sm:$0xf]
      %v837 = vld [vmem:[%s833 + $0xc] sm:$0xf]
      %v842 = vunpack.c.l.b16 %v834
      %v843 = vunpack.c.l.b16 %v835
      %v844 = vunpack.c.l.b16 %v836
      %v845 = vunpack.c.l.b16 %v837
      %v846 = vpack.c.b16 %v843, %v842
      %v847 = vpack.c.b16 %v845, %v844
      %v849 = vsel %vm759, %v846, 0
      %v852 = vsel %vm759, %v847, 0
      %854 = vmatprep.subr.bf16.mxu0 0
      %855 = vmatpush1.bf16.msra.mxu0 0
      %856 = vmatprep.subr.bf16.mxu0 0
      %857 = vmatpush1.bf16.msra.mxu0 0
      %858 = vmatprep.subr.bf16.mxu0 0
      %859 = vmatpush1.bf16.msra.mxu0 0
      %860 = vmatprep.subr.bf16.mxu0 0
      %861 = vmatpush1.bf16.msra.mxu0 0
      %862 = vmatprep.subr.bf16.mxu0 0
      %863 = vmatpush1.bf16.msra.mxu0 0
      %864 = vmatprep.subr.bf16.mxu0 0
      %865 = vmatpush1.bf16.msra.mxu0 0
      %866 = vmatprep.subr.bf16.mxu0 0
      %867 = vmatpush1.bf16.msra.mxu0 0
      %868 = vmatprep.subr.bf16.mxu0 0
      %869 = vmatpush1.bf16.msra.mxu0 %v744
      %870 = vmatprep.subr.bf16.mxu0 0
      %871 = vmatpush2.bf16.msra.mxu0 0
      %872 = vmatprep.subr.bf16.mxu0 0
      %873 = vmatpush2.bf16.msra.mxu0 0
      %874 = vmatprep.subr.bf16.mxu0 0
      %875 = vmatpush2.bf16.msra.mxu0 0
      %876 = vmatprep.subr.bf16.mxu0 0
      %877 = vmatpush2.bf16.msra.mxu0 0
      %878 = vmatprep.subr.bf16.mxu0 0
      %879 = vmatpush2.bf16.msra.mxu0 0
      %880 = vmatprep.subr.bf16.mxu0 0
      %881 = vmatpush2.bf16.msra.mxu0 0
      %882 = vmatprep.subr.bf16.mxu0 0
      %883 = vmatpush2.bf16.msra.mxu0 0
      %884 = vmatprep.subr.bf16.mxu0 0
      %885 = vmatpush2.bf16.msra.mxu0 0
      %886 = vmatprep.mubr.bf16.mxu0 0
      %887 = vmatmul.mubr.bf16.gmra.mxu0 %v849
      %v888 = vpop.f32.mrf.mxu0
      %v889 = vadd.f32 0.0, %v888
      %v890 = vpop.f32.mrf.mxu0
      %v891 = vpop.f32.mrf.mxu0
      %v892 = vadd.f32 0.0, %v891
      %v893 = vpop.f32.mrf.mxu0
      %894 = vmatprep.mubr.bf16.mxu0 0
      %895 = vmatmul.mubr.bf16.gmra.mxu0 %v852
      %v896 = vpop.f32.mrf.mxu0
      %v897 = vadd.f32 0.0, %v896
      %v898 = vpop.f32.mrf.mxu0
      %v899 = vpop.f32.mrf.mxu0
      %v900 = vadd.f32 0.0, %v899
      %v901 = vpop.f32.mrf.mxu0
      %902 = vdwg.mxu0
      %v903 = vpack.c.bf16 %v892, %v889
      %v904 = vpack.c.bf16 %v900, %v897
      %s905 = scalar_lea.vmem %s3, 64
      %v906 = vld [vmem:[%s905] sm:$0xf]
      %v907 = vld [vmem:[%s905 + $0x4] sm:$0xf]
      %v908 = vld [vmem:[%s905 + $0x8] sm:$0xf]
      %v909 = vld [vmem:[%s905 + $0xc] sm:$0xf]
      %v910 = vld [vmem:[%s905 + $0x10] sm:$0xf]
      %v911 = vld [vmem:[%s905 + $0x14] sm:$0xf]
      %v912 = vld [vmem:[%s905 + $0x18] sm:$0xf]
      %v913 = vld [vmem:[%s905 + $0x1c] sm:$0xf]
      %v914 = vld [vmem:[%s905 + $0x20] sm:$0xf]
      %v915 = vld [vmem:[%s905 + $0x24] sm:$0xf]
      %v916 = vld [vmem:[%s905 + $0x28] sm:$0xf]
      %v917 = vld [vmem:[%s905 + $0x2c] sm:$0xf]
      %v918 = vld [vmem:[%s905 + $0x30] sm:$0xf]
      %v919 = vld [vmem:[%s905 + $0x34] sm:$0xf]
      %v920 = vld [vmem:[%s905 + $0x38] sm:$0xf]
      %v921 = vld [vmem:[%s905 + $0x3c] sm:$0xf]
      %v938 = vunpack.c.l.b16 %v906
      %v939 = vunpack.c.l.b16 %v907
      %v940 = vunpack.c.l.b16 %v908
      %v941 = vunpack.c.l.b16 %v909
      %v942 = vunpack.c.l.b16 %v910
      %v943 = vunpack.c.l.b16 %v911
      %v944 = vunpack.c.l.b16 %v912
      %v945 = vunpack.c.l.b16 %v913
      %v946 = vunpack.c.l.b16 %v914
      %v947 = vunpack.c.l.b16 %v915
      %v948 = vunpack.c.l.b16 %v916
      %v949 = vunpack.c.l.b16 %v917
      %v950 = vunpack.c.l.b16 %v918
      %v951 = vunpack.c.l.b16 %v919
      %v952 = vunpack.c.l.b16 %v920
      %v953 = vunpack.c.l.b16 %v921
      %v954 = vpack.c.b16 %v939, %v938
      %v955 = vpack.c.b16 %v941, %v940
      %v956 = vpack.c.b16 %v943, %v942
      %v957 = vpack.c.b16 %v945, %v944
      %v958 = vpack.c.b16 %v947, %v946
      %v959 = vpack.c.b16 %v949, %v948
      %v960 = vpack.c.b16 %v951, %v950
      %v961 = vpack.c.b16 %v953, %v952
      %970 = vmatprep.subr.bf16.mxu0 0
      %971 = vmatpush1.bf16.msra.mxu0 %v961
      %972 = vmatprep.subr.bf16.mxu0 0
      %973 = vmatpush1.bf16.msra.mxu0 %v960
      %974 = vmatprep.subr.bf16.mxu0 0
      %975 = vmatpush1.bf16.msra.mxu0 %v959
      %976 = vmatprep.subr.bf16.mxu0 0
      %977 = vmatpush1.bf16.msra.mxu0 %v958
      %978 = vmatprep.subr.bf16.mxu0 0
      %979 = vmatpush1.bf16.msra.mxu0 %v957
      %980 = vmatprep.subr.bf16.mxu0 0
      %981 = vmatpush1.bf16.msra.mxu0 %v956
      %982 = vmatprep.subr.bf16.mxu0 0
      %983 = vmatpush1.bf16.msra.mxu0 %v955
      %984 = vmatprep.subr.bf16.mxu0 0
      %985 = vmatpush1.bf16.msra.mxu0 %v954
      %986 = vmatprep.subr.bf16.mxu0 0
      %987 = vmatpush2.bf16.msra.mxu0 0
      %988 = vmatprep.subr.bf16.mxu0 0
      %989 = vmatpush2.bf16.msra.mxu0 0
      %990 = vmatprep.subr.bf16.mxu0 0
      %991 = vmatpush2.bf16.msra.mxu0 0
      %992 = vmatprep.subr.bf16.mxu0 0
      %993 = vmatpush2.bf16.msra.mxu0 0
      %994 = vmatprep.subr.bf16.mxu0 0
      %995 = vmatpush2.bf16.msra.mxu0 0
      %996 = vmatprep.subr.bf16.mxu0 0
      %997 = vmatpush2.bf16.msra.mxu0 0
      %998 = vmatprep.subr.bf16.mxu0 0
      %999 = vmatpush2.bf16.msra.mxu0 0
      %1000 = vmatprep.subr.bf16.mxu0 0
      %1001 = vmatpush2.bf16.msra.mxu0 0
      %1002 = vmatprep.mubr.bf16.mxu0 0
      %1003 = vmatmul.mubr.bf16.gmra.mxu0 %v903
      %v1004 = vpop.f32.mrf.mxu0
      %v1005 = vadd.f32 0.0, %v1004
      %v1006 = vpop.f32.mrf.mxu0
      %v1007 = vpop.f32.mrf.mxu0
      %v1008 = vadd.f32 0.0, %v1007
      %v1009 = vpop.f32.mrf.mxu0
      %1010 = vmatprep.mubr.bf16.mxu0 0
      %1011 = vmatmul.mubr.bf16.gmra.mxu0 %v904
      %v1012 = vpop.f32.mrf.mxu0
      %v1013 = vadd.f32 0.0, %v1012
      %v1014 = vpop.f32.mrf.mxu0
      %v1015 = vpop.f32.mrf.mxu0
      %v1016 = vadd.f32 0.0, %v1015
      %v1017 = vpop.f32.mrf.mxu0
      %1018 = vdwg.mxu0
      %v1035 = vunpack.c.l.b16 %v817
      %v1036 = vunpack.c.l.b16 %v818
      %v1037 = vunpack.c.l.b16 %v819
      %v1038 = vunpack.c.l.b16 %v820
      %v1039 = vunpack.c.l.b16 %v821
      %v1040 = vunpack.c.l.b16 %v822
      %v1041 = vunpack.c.l.b16 %v823
      %v1042 = vunpack.c.l.b16 %v824
      %v1043 = vunpack.c.l.b16 %v825
      %v1044 = vunpack.c.l.b16 %v826
      %v1045 = vunpack.c.l.b16 %v827
      %v1046 = vunpack.c.l.b16 %v828
      %v1047 = vunpack.c.l.b16 %v829
      %v1048 = vunpack.c.l.b16 %v830
      %v1049 = vunpack.c.l.b16 %v831
      %v1050 = vunpack.c.l.b16 %v832
      %v1051 = vpack.c.b16 %v1036, %v1035
      %v1052 = vpack.c.b16 %v1038, %v1037
      %v1053 = vpack.c.b16 %v1040, %v1039
      %v1054 = vpack.c.b16 %v1042, %v1041
      %v1055 = vpack.c.b16 %v1044, %v1043
      %v1056 = vpack.c.b16 %v1046, %v1045
      %v1057 = vpack.c.b16 %v1048, %v1047
      %v1058 = vpack.c.b16 %v1050, %v1049
      %1067 = vmatprep.subr.bf16.mxu0 0
      %1068 = vmatpush1.bf16.msra.mxu0 %v1058
      %1069 = vmatprep.subr.bf16.mxu0 0
      %1070 = vmatpush1.bf16.msra.mxu0 %v1057
      %1071 = vmatprep.subr.bf16.mxu0 0
      %1072 = vmatpush1.bf16.msra.mxu0 %v1056
      %1073 = vmatprep.subr.bf16.mxu0 0
      %1074 = vmatpush1.bf16.msra.mxu0 %v1055
      %1075 = vmatprep.subr.bf16.mxu0 0
      %1076 = vmatpush1.bf16.msra.mxu0 %v1054
      %1077 = vmatprep.subr.bf16.mxu0 0
      %1078 = vmatpush1.bf16.msra.mxu0 %v1053
      %1079 = vmatprep.subr.bf16.mxu0 0
      %1080 = vmatpush1.bf16.msra.mxu0 %v1052
      %1081 = vmatprep.subr.bf16.mxu0 0
      %1082 = vmatpush1.bf16.msra.mxu0 %v1051
      %1083 = vmatprep.subr.bf16.mxu0 0
      %1084 = vmatpush2.bf16.msra.mxu0 0
      %1085 = vmatprep.subr.bf16.mxu0 0
      %1086 = vmatpush2.bf16.msra.mxu0 0
      %1087 = vmatprep.subr.bf16.mxu0 0
      %1088 = vmatpush2.bf16.msra.mxu0 0
      %1089 = vmatprep.subr.bf16.mxu0 0
      %1090 = vmatpush2.bf16.msra.mxu0 0
      %1091 = vmatprep.subr.bf16.mxu0 0
      %1092 = vmatpush2.bf16.msra.mxu0 0
      %1093 = vmatprep.subr.bf16.mxu0 0
      %1094 = vmatpush2.bf16.msra.mxu0 0
      %1095 = vmatprep.subr.bf16.mxu0 0
      %1096 = vmatpush2.bf16.msra.mxu0 0
      %1097 = vmatprep.subr.bf16.mxu0 0
      %1098 = vmatpush2.bf16.msra.mxu0 0
      %1099 = vmatprep.mubr.bf16.mxu0 0
      %1100 = vmatmul.mubr.bf16.gmra.mxu0 %v815
      %v1101 = vpop.f32.mrf.mxu0
      %v1102 = vadd.f32 %v1005, %v1101
      %v1103 = vpop.f32.mrf.mxu0
      %v1104 = vpop.f32.mrf.mxu0
      %v1105 = vadd.f32 %v1008, %v1104
      %v1106 = vpop.f32.mrf.mxu0
      %1107 = vmatprep.mubr.bf16.mxu0 0
      %1108 = vmatmul.mubr.bf16.gmra.mxu0 %v816
      %v1109 = vpop.f32.mrf.mxu0
      %v1110 = vadd.f32 %v1013, %v1109
      %v1111 = vpop.f32.mrf.mxu0
      %v1112 = vpop.f32.mrf.mxu0
      %v1113 = vadd.f32 %v1016, %v1112
      %v1114 = vpop.f32.mrf.mxu0
      %1115 = vdwg.mxu0
      %s1116 = scalar_lea.vmem %s4, 32
      %v1117 = vld [vmem:[%s1116] sm:$0xf]
      %v1118 = vld [vmem:[%s1116 + $0x4] sm:$0xf]
      %v1119 = vld [vmem:[%s1116 + $0x8] sm:$0xf]
      %v1120 = vld [vmem:[%s1116 + $0xc] sm:$0xf]
      %v1125 = vunpack.c.l.b16 %v1117
      %v1126 = vunpack.c.l.b16 %v1118
      %v1127 = vunpack.c.l.b16 %v1119
      %v1128 = vunpack.c.l.b16 %v1120
      %v1129 = vpack.c.b16 %v1126, %v1125
      %v1130 = vpack.c.b16 %v1128, %v1127
      %v1132 = vsel %vm759, %v1129, 0
      %v1135 = vsel %vm759, %v1130, 0
      %1137 = vmatprep.subr.bf16.mxu0 0
      %1138 = vmatpush1.bf16.msra.mxu0 0
      %1139 = vmatprep.subr.bf16.mxu0 0
      %1140 = vmatpush1.bf16.msra.mxu0 0
      %1141 = vmatprep.subr.bf16.mxu0 0
      %1142 = vmatpush1.bf16.msra.mxu0 0
      %1143 = vmatprep.subr.bf16.mxu0 0
      %1144 = vmatpush1.bf16.msra.mxu0 0
      %1145 = vmatprep.subr.bf16.mxu0 0
      %1146 = vmatpush1.bf16.msra.mxu0 0
      %1147 = vmatprep.subr.bf16.mxu0 0
      %1148 = vmatpush1.bf16.msra.mxu0 0
      %1149 = vmatprep.subr.bf16.mxu0 0
      %1150 = vmatpush1.bf16.msra.mxu0 0
      %1151 = vmatprep.subr.bf16.mxu0 0
      %1152 = vmatpush1.bf16.msra.mxu0 %v744
      %1153 = vmatprep.subr.bf16.mxu0 0
      %1154 = vmatpush2.bf16.msra.mxu0 0
      %1155 = vmatprep.subr.bf16.mxu0 0
      %1156 = vmatpush2.bf16.msra.mxu0 0
      %1157 = vmatprep.subr.bf16.mxu0 0
      %1158 = vmatpush2.bf16.msra.mxu0 0
      %1159 = vmatprep.subr.bf16.mxu0 0
      %1160 = vmatpush2.bf16.msra.mxu0 0
      %1161 = vmatprep.subr.bf16.mxu0 0
      %1162 = vmatpush2.bf16.msra.mxu0 0
      %1163 = vmatprep.subr.bf16.mxu0 0
      %1164 = vmatpush2.bf16.msra.mxu0 0
      %1165 = vmatprep.subr.bf16.mxu0 0
      %1166 = vmatpush2.bf16.msra.mxu0 0
      %1167 = vmatprep.subr.bf16.mxu0 0
      %1168 = vmatpush2.bf16.msra.mxu0 0
      %1169 = vmatprep.mubr.bf16.mxu0 0
      %1170 = vmatmul.mubr.bf16.gmra.mxu0 %v1132
      %v1171 = vpop.f32.mrf.mxu0
      %v1172 = vadd.f32 0.0, %v1171
      %v1173 = vpop.f32.mrf.mxu0
      %v1174 = vpop.f32.mrf.mxu0
      %v1175 = vadd.f32 0.0, %v1174
      %v1176 = vpop.f32.mrf.mxu0
      %1177 = vmatprep.mubr.bf16.mxu0 0
      %1178 = vmatmul.mubr.bf16.gmra.mxu0 %v1135
      %v1179 = vpop.f32.mrf.mxu0
      %v1180 = vadd.f32 0.0, %v1179
      %v1181 = vpop.f32.mrf.mxu0
      %v1182 = vpop.f32.mrf.mxu0
      %v1183 = vadd.f32 0.0, %v1182
      %v1184 = vpop.f32.mrf.mxu0
      %1185 = vdwg.mxu0
      %v1186 = vpack.c.bf16 %v1175, %v1172
      %v1187 = vpack.c.bf16 %v1183, %v1180
      %s1188 = scalar_lea.vmem %s3, 128
      %v1189 = vld [vmem:[%s1188] sm:$0xf]
      %v1190 = vld [vmem:[%s1188 + $0x4] sm:$0xf]
      %v1191 = vld [vmem:[%s1188 + $0x8] sm:$0xf]
      %v1192 = vld [vmem:[%s1188 + $0xc] sm:$0xf]
      %v1193 = vld [vmem:[%s1188 + $0x10] sm:$0xf]
      %v1194 = vld [vmem:[%s1188 + $0x14] sm:$0xf]
      %v1195 = vld [vmem:[%s1188 + $0x18] sm:$0xf]
      %v1196 = vld [vmem:[%s1188 + $0x1c] sm:$0xf]
      %v1197 = vld [vmem:[%s1188 + $0x20] sm:$0xf]
      %v1198 = vld [vmem:[%s1188 + $0x24] sm:$0xf]
      %v1199 = vld [vmem:[%s1188 + $0x28] sm:$0xf]
      %v1200 = vld [vmem:[%s1188 + $0x2c] sm:$0xf]
      %v1201 = vld [vmem:[%s1188 + $0x30] sm:$0xf]
      %v1202 = vld [vmem:[%s1188 + $0x34] sm:$0xf]
      %v1203 = vld [vmem:[%s1188 + $0x38] sm:$0xf]
      %v1204 = vld [vmem:[%s1188 + $0x3c] sm:$0xf]
      %v1221 = vunpack.c.l.b16 %v1189
      %v1222 = vunpack.c.l.b16 %v1190
      %v1223 = vunpack.c.l.b16 %v1191
      %v1224 = vunpack.c.l.b16 %v1192
      %v1225 = vunpack.c.l.b16 %v1193
      %v1226 = vunpack.c.l.b16 %v1194
      %v1227 = vunpack.c.l.b16 %v1195
      %v1228 = vunpack.c.l.b16 %v1196
      %v1229 = vunpack.c.l.b16 %v1197
      %v1230 = vunpack.c.l.b16 %v1198
      %v1231 = vunpack.c.l.b16 %v1199
      %v1232 = vunpack.c.l.b16 %v1200
      %v1233 = vunpack.c.l.b16 %v1201
      %v1234 = vunpack.c.l.b16 %v1202
      %v1235 = vunpack.c.l.b16 %v1203
      %v1236 = vunpack.c.l.b16 %v1204
      %v1237 = vpack.c.b16 %v1222, %v1221
      %v1238 = vpack.c.b16 %v1224, %v1223
      %v1239 = vpack.c.b16 %v1226, %v1225
      %v1240 = vpack.c.b16 %v1228, %v1227
      %v1241 = vpack.c.b16 %v1230, %v1229
      %v1242 = vpack.c.b16 %v1232, %v1231
      %v1243 = vpack.c.b16 %v1234, %v1233
      %v1244 = vpack.c.b16 %v1236, %v1235
      %1253 = vmatprep.subr.bf16.mxu0 0
      %1254 = vmatpush1.bf16.msra.mxu0 %v1244
      %1255 = vmatprep.subr.bf16.mxu0 0
      %1256 = vmatpush1.bf16.msra.mxu0 %v1243
      %1257 = vmatprep.subr.bf16.mxu0 0
      %1258 = vmatpush1.bf16.msra.mxu0 %v1242
      %1259 = vmatprep.subr.bf16.mxu0 0
      %1260 = vmatpush1.bf16.msra.mxu0 %v1241
      %1261 = vmatprep.subr.bf16.mxu0 0
      %1262 = vmatpush1.bf16.msra.mxu0 %v1240
      %1263 = vmatprep.subr.bf16.mxu0 0
      %1264 = vmatpush1.bf16.msra.mxu0 %v1239
      %1265 = vmatprep.subr.bf16.mxu0 0
      %1266 = vmatpush1.bf16.msra.mxu0 %v1238
      %1267 = vmatprep.subr.bf16.mxu0 0
      %1268 = vmatpush1.bf16.msra.mxu0 %v1237
      %1269 = vmatprep.subr.bf16.mxu0 0
      %1270 = vmatpush2.bf16.msra.mxu0 0
      %1271 = vmatprep.subr.bf16.mxu0 0
      %1272 = vmatpush2.bf16.msra.mxu0 0
      %1273 = vmatprep.subr.bf16.mxu0 0
      %1274 = vmatpush2.bf16.msra.mxu0 0
      %1275 = vmatprep.subr.bf16.mxu0 0
      %1276 = vmatpush2.bf16.msra.mxu0 0
      %1277 = vmatprep.subr.bf16.mxu0 0
      %1278 = vmatpush2.bf16.msra.mxu0 0
      %1279 = vmatprep.subr.bf16.mxu0 0
      %1280 = vmatpush2.bf16.msra.mxu0 0
      %1281 = vmatprep.subr.bf16.mxu0 0
      %1282 = vmatpush2.bf16.msra.mxu0 0
      %1283 = vmatprep.subr.bf16.mxu0 0
      %1284 = vmatpush2.bf16.msra.mxu0 0
      %1285 = vmatprep.mubr.bf16.mxu0 0
      %1286 = vmatmul.mubr.bf16.gmra.mxu0 %v1186
      %v1287 = vpop.f32.mrf.mxu0
      %v1288 = vadd.f32 0.0, %v1287
      %v1289 = vpop.f32.mrf.mxu0
      %v1290 = vpop.f32.mrf.mxu0
      %v1291 = vadd.f32 0.0, %v1290
      %v1292 = vpop.f32.mrf.mxu0
      %1293 = vmatprep.mubr.bf16.mxu0 0
      %1294 = vmatmul.mubr.bf16.gmra.mxu0 %v1187
      %v1295 = vpop.f32.mrf.mxu0
      %v1296 = vadd.f32 0.0, %v1295
      %v1297 = vpop.f32.mrf.mxu0
      %v1298 = vpop.f32.mrf.mxu0
      %v1299 = vadd.f32 0.0, %v1298
      %v1300 = vpop.f32.mrf.mxu0
      %1301 = vdwg.mxu0
      %v1302 = vadd.f32 %v1102, %v1288
      %v1303 = vadd.f32 %v1105, %v1291
      %v1304 = vadd.f32 %v1110, %v1296
      %v1305 = vadd.f32 %v1113, %v1299
      %s1306 = scalar_lea.vmem %s4, 48
      %v1307 = vld [vmem:[%s1306] sm:$0xf]
      %v1308 = vld [vmem:[%s1306 + $0x4] sm:$0xf]
      %v1309 = vld [vmem:[%s1306 + $0x8] sm:$0xf]
      %v1310 = vld [vmem:[%s1306 + $0xc] sm:$0xf]
      %v1315 = vunpack.c.l.b16 %v1307
      %v1316 = vunpack.c.l.b16 %v1308
      %v1317 = vunpack.c.l.b16 %v1309
      %v1318 = vunpack.c.l.b16 %v1310
      %v1319 = vpack.c.b16 %v1316, %v1315
      %v1320 = vpack.c.b16 %v1318, %v1317
      %v1322 = vsel %vm759, %v1319, 0
      %v1325 = vsel %vm759, %v1320, 0
      %1327 = vmatprep.subr.bf16.mxu0 0
      %1328 = vmatpush1.bf16.msra.mxu0 0
      %1329 = vmatprep.subr.bf16.mxu0 0
      %1330 = vmatpush1.bf16.msra.mxu0 0
      %1331 = vmatprep.subr.bf16.mxu0 0
      %1332 = vmatpush1.bf16.msra.mxu0 0
      %1333 = vmatprep.subr.bf16.mxu0 0
      %1334 = vmatpush1.bf16.msra.mxu0 0
      %1335 = vmatprep.subr.bf16.mxu0 0
      %1336 = vmatpush1.bf16.msra.mxu0 0
      %1337 = vmatprep.subr.bf16.mxu0 0
      %1338 = vmatpush1.bf16.msra.mxu0 0
      %1339 = vmatprep.subr.bf16.mxu0 0
      %1340 = vmatpush1.bf16.msra.mxu0 0
      %1341 = vmatprep.subr.bf16.mxu0 0
      %1342 = vmatpush1.bf16.msra.mxu0 %v744
      %1343 = vmatprep.subr.bf16.mxu0 0
      %1344 = vmatpush2.bf16.msra.mxu0 0
      %1345 = vmatprep.subr.bf16.mxu0 0
      %1346 = vmatpush2.bf16.msra.mxu0 0
      %1347 = vmatprep.subr.bf16.mxu0 0
      %1348 = vmatpush2.bf16.msra.mxu0 0
      %1349 = vmatprep.subr.bf16.mxu0 0
      %1350 = vmatpush2.bf16.msra.mxu0 0
      %1351 = vmatprep.subr.bf16.mxu0 0
      %1352 = vmatpush2.bf16.msra.mxu0 0
      %1353 = vmatprep.subr.bf16.mxu0 0
      %1354 = vmatpush2.bf16.msra.mxu0 0
      %1355 = vmatprep.subr.bf16.mxu0 0
      %1356 = vmatpush2.bf16.msra.mxu0 0
      %1357 = vmatprep.subr.bf16.mxu0 0
      %1358 = vmatpush2.bf16.msra.mxu0 0
      %1359 = vmatprep.mubr.bf16.mxu0 0
      %1360 = vmatmul.mubr.bf16.gmra.mxu0 %v1322
      %v1361 = vpop.f32.mrf.mxu0
      %v1362 = vadd.f32 0.0, %v1361
      %v1363 = vpop.f32.mrf.mxu0
      %v1364 = vpop.f32.mrf.mxu0
      %v1365 = vadd.f32 0.0, %v1364
      %v1366 = vpop.f32.mrf.mxu0
      %1367 = vmatprep.mubr.bf16.mxu0 0
      %1368 = vmatmul.mubr.bf16.gmra.mxu0 %v1325
      %v1369 = vpop.f32.mrf.mxu0
      %v1370 = vadd.f32 0.0, %v1369
      %v1371 = vpop.f32.mrf.mxu0
      %v1372 = vpop.f32.mrf.mxu0
      %v1373 = vadd.f32 0.0, %v1372
      %v1374 = vpop.f32.mrf.mxu0
      %1375 = vdwg.mxu0
      %v1376 = vpack.c.bf16 %v1365, %v1362
      %v1377 = vpack.c.bf16 %v1373, %v1370
      %s1378 = scalar_lea.vmem %s3, 192
      %v1379 = vld [vmem:[%s1378] sm:$0xf]
      %v1380 = vld [vmem:[%s1378 + $0x4] sm:$0xf]
      %v1381 = vld [vmem:[%s1378 + $0x8] sm:$0xf]
      %v1382 = vld [vmem:[%s1378 + $0xc] sm:$0xf]
      %v1383 = vld [vmem:[%s1378 + $0x10] sm:$0xf]
      %v1384 = vld [vmem:[%s1378 + $0x14] sm:$0xf]
      %v1385 = vld [vmem:[%s1378 + $0x18] sm:$0xf]
      %v1386 = vld [vmem:[%s1378 + $0x1c] sm:$0xf]
      %v1387 = vld [vmem:[%s1378 + $0x20] sm:$0xf]
      %v1388 = vld [vmem:[%s1378 + $0x24] sm:$0xf]
      %v1389 = vld [vmem:[%s1378 + $0x28] sm:$0xf]
      %v1390 = vld [vmem:[%s1378 + $0x2c] sm:$0xf]
      %v1391 = vld [vmem:[%s1378 + $0x30] sm:$0xf]
      %v1392 = vld [vmem:[%s1378 + $0x34] sm:$0xf]
      %v1393 = vld [vmem:[%s1378 + $0x38] sm:$0xf]
      %v1394 = vld [vmem:[%s1378 + $0x3c] sm:$0xf]
      %v1411 = vunpack.c.l.b16 %v1379
      %v1412 = vunpack.c.l.b16 %v1380
      %v1413 = vunpack.c.l.b16 %v1381
      %v1414 = vunpack.c.l.b16 %v1382
      %v1415 = vunpack.c.l.b16 %v1383
      %v1416 = vunpack.c.l.b16 %v1384
      %v1417 = vunpack.c.l.b16 %v1385
      %v1418 = vunpack.c.l.b16 %v1386
      %v1419 = vunpack.c.l.b16 %v1387
      %v1420 = vunpack.c.l.b16 %v1388
      %v1421 = vunpack.c.l.b16 %v1389
      %v1422 = vunpack.c.l.b16 %v1390
      %v1423 = vunpack.c.l.b16 %v1391
      %v1424 = vunpack.c.l.b16 %v1392
      %v1425 = vunpack.c.l.b16 %v1393
      %v1426 = vunpack.c.l.b16 %v1394
      %v1427 = vpack.c.b16 %v1412, %v1411
      %v1428 = vpack.c.b16 %v1414, %v1413
      %v1429 = vpack.c.b16 %v1416, %v1415
      %v1430 = vpack.c.b16 %v1418, %v1417
      %v1431 = vpack.c.b16 %v1420, %v1419
      %v1432 = vpack.c.b16 %v1422, %v1421
      %v1433 = vpack.c.b16 %v1424, %v1423
      %v1434 = vpack.c.b16 %v1426, %v1425
      %1443 = vmatprep.subr.bf16.mxu0 0
      %1444 = vmatpush1.bf16.msra.mxu0 %v1434
      %1445 = vmatprep.subr.bf16.mxu0 0
      %1446 = vmatpush1.bf16.msra.mxu0 %v1433
      %1447 = vmatprep.subr.bf16.mxu0 0
      %1448 = vmatpush1.bf16.msra.mxu0 %v1432
      %1449 = vmatprep.subr.bf16.mxu0 0
      %1450 = vmatpush1.bf16.msra.mxu0 %v1431
      %1451 = vmatprep.subr.bf16.mxu0 0
      %1452 = vmatpush1.bf16.msra.mxu0 %v1430
      %1453 = vmatprep.subr.bf16.mxu0 0
      %1454 = vmatpush1.bf16.msra.mxu0 %v1429
      %1455 = vmatprep.subr.bf16.mxu0 0
      %1456 = vmatpush1.bf16.msra.mxu0 %v1428
      %1457 = vmatprep.subr.bf16.mxu0 0
      %1458 = vmatpush1.bf16.msra.mxu0 %v1427
      %1459 = vmatprep.subr.bf16.mxu0 0
      %1460 = vmatpush2.bf16.msra.mxu0 0
      %1461 = vmatprep.subr.bf16.mxu0 0
      %1462 = vmatpush2.bf16.msra.mxu0 0
      %1463 = vmatprep.subr.bf16.mxu0 0
      %1464 = vmatpush2.bf16.msra.mxu0 0
      %1465 = vmatprep.subr.bf16.mxu0 0
      %1466 = vmatpush2.bf16.msra.mxu0 0
      %1467 = vmatprep.subr.bf16.mxu0 0
      %1468 = vmatpush2.bf16.msra.mxu0 0
      %1469 = vmatprep.subr.bf16.mxu0 0
      %1470 = vmatpush2.bf16.msra.mxu0 0
      %1471 = vmatprep.subr.bf16.mxu0 0
      %1472 = vmatpush2.bf16.msra.mxu0 0
      %1473 = vmatprep.subr.bf16.mxu0 0
      %1474 = vmatpush2.bf16.msra.mxu0 0
      %1475 = vmatprep.mubr.bf16.mxu0 0
      %1476 = vmatmul.mubr.bf16.gmra.mxu0 %v1376
      %v1477 = vpop.f32.mrf.mxu0
      %v1478 = vadd.f32 0.0, %v1477
      %v1479 = vpop.f32.mrf.mxu0
      %v1480 = vpop.f32.mrf.mxu0
      %v1481 = vadd.f32 0.0, %v1480
      %v1482 = vpop.f32.mrf.mxu0
      %1483 = vmatprep.mubr.bf16.mxu0 0
      %1484 = vmatmul.mubr.bf16.gmra.mxu0 %v1377
      %v1485 = vpop.f32.mrf.mxu0
      %v1486 = vadd.f32 0.0, %v1485
      %v1487 = vpop.f32.mrf.mxu0
      %v1488 = vpop.f32.mrf.mxu0
      %v1489 = vadd.f32 0.0, %v1488
      %v1490 = vpop.f32.mrf.mxu0
      %1491 = vdwg.mxu0
      %v1492 = vadd.f32 %v1302, %v1478
      %v1493 = vadd.f32 %v1303, %v1481
      %v1494 = vadd.f32 %v1304, %v1486
      %v1495 = vadd.f32 %v1305, %v1489
      %v1496 = vmax.f32 %v1492, 0.0
      %v1497 = vmax.f32 %v1493, 0.0
      %v1498 = vmax.f32 %v1494, 0.0
      %v1499 = vmax.f32 %v1495, 0.0
      %v1500 = vpack.c.bf16 %v1497, %v1496
      %v1501 = vpack.c.bf16 %v1499, %v1498
      %v1502 = vld [vmem:[%s6] sm:$0xf]
      %v1503 = vld [vmem:[%s6 + $0x4] sm:$0xf]
      %v1504 = vld [vmem:[%s6 + $0x8] sm:$0xf]
      %v1505 = vld [vmem:[%s6 + $0xc] sm:$0xf]
      %v1506 = vld [vmem:[%s6 + $0x10] sm:$0xf]
      %v1507 = vld [vmem:[%s6 + $0x14] sm:$0xf]
      %v1508 = vld [vmem:[%s6 + $0x18] sm:$0xf]
      %v1509 = vld [vmem:[%s6 + $0x1c] sm:$0xf]
      %v1518 = vunpack.c.l.b16 %v1502
      %v1519 = vunpack.c.l.b16 %v1503
      %v1520 = vunpack.c.l.b16 %v1504
      %v1521 = vunpack.c.l.b16 %v1505
      %v1522 = vunpack.c.l.b16 %v1506
      %v1523 = vunpack.c.l.b16 %v1507
      %v1524 = vunpack.c.l.b16 %v1508
      %v1525 = vunpack.c.l.b16 %v1509
      %v1526 = vpack.c.b16 %v1519, %v1518
      %v1527 = vpack.c.b16 %v1521, %v1520
      %v1528 = vpack.c.b16 %v1523, %v1522
      %v1529 = vpack.c.b16 %v1525, %v1524
      %v1531 = vsel %vm409, %v1526, 0
      %v1534 = vsel %vm409, %v1527, 0
      %v1537 = vsel %vm409, %v1528, 0
      %v1540 = vsel %vm409, %v1529, 0
      %1542 = vmatprep.subr.bf16.mxu0 0
      %1543 = vmatpush1.bf16.msra.mxu0 0
      %1544 = vmatprep.subr.bf16.mxu0 0
      %1545 = vmatpush1.bf16.msra.mxu0 0
      %1546 = vmatprep.subr.bf16.mxu0 0
      %1547 = vmatpush1.bf16.msra.mxu0 0
      %1548 = vmatprep.subr.bf16.mxu0 0
      %1549 = vmatpush1.bf16.msra.mxu0 0
      %1550 = vmatprep.subr.bf16.mxu0 0
      %1551 = vmatpush1.bf16.msra.mxu0 0
      %1552 = vmatprep.subr.bf16.mxu0 0
      %1553 = vmatpush1.bf16.msra.mxu0 0
      %1554 = vmatprep.subr.bf16.mxu0 0
      %1555 = vmatpush1.bf16.msra.mxu0 %v1501
      %1556 = vmatprep.subr.bf16.mxu0 0
      %1557 = vmatpush1.bf16.msra.mxu0 %v1500
      %1558 = vmatprep.subr.bf16.mxu0 0
      %1559 = vmatpush2.bf16.msra.mxu0 0
      %1560 = vmatprep.subr.bf16.mxu0 0
      %1561 = vmatpush2.bf16.msra.mxu0 0
      %1562 = vmatprep.subr.bf16.mxu0 0
      %1563 = vmatpush2.bf16.msra.mxu0 0
      %1564 = vmatprep.subr.bf16.mxu0 0
      %1565 = vmatpush2.bf16.msra.mxu0 0
      %1566 = vmatprep.subr.bf16.mxu0 0
      %1567 = vmatpush2.bf16.msra.mxu0 0
      %1568 = vmatprep.subr.bf16.mxu0 0
      %1569 = vmatpush2.bf16.msra.mxu0 0
      %1570 = vmatprep.subr.bf16.mxu0 0
      %1571 = vmatpush2.bf16.msra.mxu0 0
      %1572 = vmatprep.subr.bf16.mxu0 0
      %1573 = vmatpush2.bf16.msra.mxu0 0
      %1574 = vmatprep.mubr.bf16.mxu0 0
      %1575 = vmatmul.mubr.bf16.gmra.mxu0 %v1531
      %v1576 = vpop.f32.mrf.mxu0
      %v1577 = vadd.f32 0.0, %v1576
      %v1578 = vpop.f32.mrf.mxu0
      %v1579 = vpop.f32.mrf.mxu0
      %v1580 = vadd.f32 0.0, %v1579
      %v1581 = vpop.f32.mrf.mxu0
      %1582 = vmatprep.mubr.bf16.mxu0 0
      %1583 = vmatmul.mubr.bf16.gmra.mxu0 %v1534
      %v1584 = vpop.f32.mrf.mxu0
      %v1585 = vadd.f32 0.0, %v1584
      %v1586 = vpop.f32.mrf.mxu0
      %v1587 = vpop.f32.mrf.mxu0
      %v1588 = vadd.f32 0.0, %v1587
      %v1589 = vpop.f32.mrf.mxu0
      %1590 = vmatprep.mubr.bf16.mxu0 0
      %1591 = vmatmul.mubr.bf16.gmra.mxu0 %v1537
      %v1592 = vpop.f32.mrf.mxu0
      %v1593 = vadd.f32 0.0, %v1592
      %v1594 = vpop.f32.mrf.mxu0
      %v1595 = vpop.f32.mrf.mxu0
      %v1596 = vadd.f32 0.0, %v1595
      %v1597 = vpop.f32.mrf.mxu0
      %1598 = vmatprep.mubr.bf16.mxu0 0
      %1599 = vmatmul.mubr.bf16.gmra.mxu0 %v1540
      %v1600 = vpop.f32.mrf.mxu0
      %v1601 = vadd.f32 0.0, %v1600
      %v1602 = vpop.f32.mrf.mxu0
      %v1603 = vpop.f32.mrf.mxu0
      %v1604 = vadd.f32 0.0, %v1603
      %v1605 = vpop.f32.mrf.mxu0
      %1606 = vdwg.mxu0
      %v1607 = vpack.c.bf16 %v1580, %v1577
      %v1608 = vpack.c.bf16 %v1588, %v1585
      %v1609 = vpack.c.bf16 %v1596, %v1593
      %v1610 = vpack.c.bf16 %v1604, %v1601
      %v1611 = vld [vmem:[%s5] sm:$0xff]
      %v1612 = vld [vmem:[%s5 + $0x8] sm:$0xff]
      %v1613 = vld [vmem:[%s5 + $0x10] sm:$0xff]
      %v1614 = vld [vmem:[%s5 + $0x18] sm:$0xff]
      %v1615 = vld [vmem:[%s5 + $0x20] sm:$0xff]
      %v1616 = vld [vmem:[%s5 + $0x28] sm:$0xff]
      %v1617 = vld [vmem:[%s5 + $0x30] sm:$0xff]
      %v1618 = vld [vmem:[%s5 + $0x38] sm:$0xff]
      %v1619 = vld [vmem:[%s5 + $0x40] sm:$0xff]
      %v1620 = vld [vmem:[%s5 + $0x48] sm:$0xff]
      %v1621 = vld [vmem:[%s5 + $0x50] sm:$0xff]
      %v1622 = vld [vmem:[%s5 + $0x58] sm:$0xff]
      %v1623 = vld [vmem:[%s5 + $0x60] sm:$0xff]
      %v1624 = vld [vmem:[%s5 + $0x68] sm:$0xff]
      %v1625 = vld [vmem:[%s5 + $0x70] sm:$0xff]
      %v1626 = vld [vmem:[%s5 + $0x78] sm:$0xff]
      %s1627 = scalar_lea.vmem %s6, 32
      %v1628 = vld [vmem:[%s1627] sm:$0xf]
      %v1629 = vld [vmem:[%s1627 + $0x4] sm:$0xf]
      %v1630 = vld [vmem:[%s1627 + $0x8] sm:$0xf]
      %v1631 = vld [vmem:[%s1627 + $0xc] sm:$0xf]
      %v1632 = vld [vmem:[%s1627 + $0x10] sm:$0xf]
      %v1633 = vld [vmem:[%s1627 + $0x14] sm:$0xf]
      %v1634 = vld [vmem:[%s1627 + $0x18] sm:$0xf]
      %v1635 = vld [vmem:[%s1627 + $0x1c] sm:$0xf]
      %v1644 = vunpack.c.l.b16 %v1628
      %v1645 = vunpack.c.l.b16 %v1629
      %v1646 = vunpack.c.l.b16 %v1630
      %v1647 = vunpack.c.l.b16 %v1631
      %v1648 = vunpack.c.l.b16 %v1632
      %v1649 = vunpack.c.l.b16 %v1633
      %v1650 = vunpack.c.l.b16 %v1634
      %v1651 = vunpack.c.l.b16 %v1635
      %v1652 = vpack.c.b16 %v1645, %v1644
      %v1653 = vpack.c.b16 %v1647, %v1646
      %v1654 = vpack.c.b16 %v1649, %v1648
      %v1655 = vpack.c.b16 %v1651, %v1650
      %v1657 = vsel %vm409, %v1652, 0
      %v1660 = vsel %vm409, %v1653, 0
      %v1663 = vsel %vm409, %v1654, 0
      %v1666 = vsel %vm409, %v1655, 0
      %1668 = vmatprep.subr.bf16.mxu0 0
      %1669 = vmatpush1.bf16.msra.mxu0 0
      %1670 = vmatprep.subr.bf16.mxu0 0
      %1671 = vmatpush1.bf16.msra.mxu0 0
      %1672 = vmatprep.subr.bf16.mxu0 0
      %1673 = vmatpush1.bf16.msra.mxu0 0
      %1674 = vmatprep.subr.bf16.mxu0 0
      %1675 = vmatpush1.bf16.msra.mxu0 0
      %1676 = vmatprep.subr.bf16.mxu0 0
      %1677 = vmatpush1.bf16.msra.mxu0 0
      %1678 = vmatprep.subr.bf16.mxu0 0
      %1679 = vmatpush1.bf16.msra.mxu0 0
      %1680 = vmatprep.subr.bf16.mxu0 0
      %1681 = vmatpush1.bf16.msra.mxu0 %v1501
      %1682 = vmatprep.subr.bf16.mxu0 0
      %1683 = vmatpush1.bf16.msra.mxu0 %v1500
      %1684 = vmatprep.subr.bf16.mxu0 0
      %1685 = vmatpush2.bf16.msra.mxu0 0
      %1686 = vmatprep.subr.bf16.mxu0 0
      %1687 = vmatpush2.bf16.msra.mxu0 0
      %1688 = vmatprep.subr.bf16.mxu0 0
      %1689 = vmatpush2.bf16.msra.mxu0 0
      %1690 = vmatprep.subr.bf16.mxu0 0
      %1691 = vmatpush2.bf16.msra.mxu0 0
      %1692 = vmatprep.subr.bf16.mxu0 0
      %1693 = vmatpush2.bf16.msra.mxu0 0
      %1694 = vmatprep.subr.bf16.mxu0 0
      %1695 = vmatpush2.bf16.msra.mxu0 0
      %1696 = vmatprep.subr.bf16.mxu0 0
      %1697 = vmatpush2.bf16.msra.mxu0 0
      %1698 = vmatprep.subr.bf16.mxu0 0
      %1699 = vmatpush2.bf16.msra.mxu0 0
      %1700 = vmatprep.mubr.bf16.mxu0 0
      %1701 = vmatmul.mubr.bf16.gmra.mxu0 %v1657
      %v1702 = vpop.f32.mrf.mxu0
      %v1703 = vadd.f32 0.0, %v1702
      %v1704 = vpop.f32.mrf.mxu0
      %v1705 = vpop.f32.mrf.mxu0
      %v1706 = vadd.f32 0.0, %v1705
      %v1707 = vpop.f32.mrf.mxu0
      %1708 = vmatprep.mubr.bf16.mxu0 0
      %1709 = vmatmul.mubr.bf16.gmra.mxu0 %v1660
      %v1710 = vpop.f32.mrf.mxu0
      %v1711 = vadd.f32 0.0, %v1710
      %v1712 = vpop.f32.mrf.mxu0
      %v1713 = vpop.f32.mrf.mxu0
      %v1714 = vadd.f32 0.0, %v1713
      %v1715 = vpop.f32.mrf.mxu0
      %1716 = vmatprep.mubr.bf16.mxu0 0
      %1717 = vmatmul.mubr.bf16.gmra.mxu0 %v1663
      %v1718 = vpop.f32.mrf.mxu0
      %v1719 = vadd.f32 0.0, %v1718
      %v1720 = vpop.f32.mrf.mxu0
      %v1721 = vpop.f32.mrf.mxu0
      %v1722 = vadd.f32 0.0, %v1721
      %v1723 = vpop.f32.mrf.mxu0
      %1724 = vmatprep.mubr.bf16.mxu0 0
      %1725 = vmatmul.mubr.bf16.gmra.mxu0 %v1666
      %v1726 = vpop.f32.mrf.mxu0
      %v1727 = vadd.f32 0.0, %v1726
      %v1728 = vpop.f32.mrf.mxu0
      %v1729 = vpop.f32.mrf.mxu0
      %v1730 = vadd.f32 0.0, %v1729
      %v1731 = vpop.f32.mrf.mxu0
      %1732 = vdwg.mxu0
      %v1733 = vpack.c.bf16 %v1706, %v1703
      %v1734 = vpack.c.bf16 %v1714, %v1711
      %v1735 = vpack.c.bf16 %v1722, %v1719
      %v1736 = vpack.c.bf16 %v1730, %v1727
      %s1737 = scalar_lea.vmem %s5, 128
      %v1738 = vld [vmem:[%s1737] sm:$0xff]
      %v1739 = vld [vmem:[%s1737 + $0x8] sm:$0xff]
      %v1740 = vld [vmem:[%s1737 + $0x10] sm:$0xff]
      %v1741 = vld [vmem:[%s1737 + $0x18] sm:$0xff]
      %v1742 = vld [vmem:[%s1737 + $0x20] sm:$0xff]
      %v1743 = vld [vmem:[%s1737 + $0x28] sm:$0xff]
      %v1744 = vld [vmem:[%s1737 + $0x30] sm:$0xff]
      %v1745 = vld [vmem:[%s1737 + $0x38] sm:$0xff]
      %v1746 = vld [vmem:[%s1737 + $0x40] sm:$0xff]
      %v1747 = vld [vmem:[%s1737 + $0x48] sm:$0xff]
      %v1748 = vld [vmem:[%s1737 + $0x50] sm:$0xff]
      %v1749 = vld [vmem:[%s1737 + $0x58] sm:$0xff]
      %v1750 = vld [vmem:[%s1737 + $0x60] sm:$0xff]
      %v1751 = vld [vmem:[%s1737 + $0x68] sm:$0xff]
      %v1752 = vld [vmem:[%s1737 + $0x70] sm:$0xff]
      %v1753 = vld [vmem:[%s1737 + $0x78] sm:$0xff]
      %v1770 = vunpack.c.l.b16 %v1738
      %v1771 = vunpack.c.h.b16 %v1738
      %v1772 = vunpack.c.l.b16 %v1739
      %v1773 = vunpack.c.h.b16 %v1739
      %v1774 = vunpack.c.l.b16 %v1740
      %v1775 = vunpack.c.h.b16 %v1740
      %v1776 = vunpack.c.l.b16 %v1741
      %v1777 = vunpack.c.h.b16 %v1741
      %v1778 = vunpack.c.l.b16 %v1742
      %v1779 = vunpack.c.h.b16 %v1742
      %v1780 = vunpack.c.l.b16 %v1743
      %v1781 = vunpack.c.h.b16 %v1743
      %v1782 = vunpack.c.l.b16 %v1744
      %v1783 = vunpack.c.h.b16 %v1744
      %v1784 = vunpack.c.l.b16 %v1745
      %v1785 = vunpack.c.h.b16 %v1745
      %v1786 = vunpack.c.l.b16 %v1746
      %v1787 = vunpack.c.h.b16 %v1746
      %v1788 = vunpack.c.l.b16 %v1747
      %v1789 = vunpack.c.h.b16 %v1747
      %v1790 = vunpack.c.l.b16 %v1748
      %v1791 = vunpack.c.h.b16 %v1748
      %v1792 = vunpack.c.l.b16 %v1749
      %v1793 = vunpack.c.h.b16 %v1749
      %v1794 = vunpack.c.l.b16 %v1750
      %v1795 = vunpack.c.h.b16 %v1750
      %v1796 = vunpack.c.l.b16 %v1751
      %v1797 = vunpack.c.h.b16 %v1751
      %v1798 = vunpack.c.l.b16 %v1752
      %v1799 = vunpack.c.h.b16 %v1752
      %v1800 = vunpack.c.l.b16 %v1753
      %v1801 = vunpack.c.h.b16 %v1753
      %v1802 = vpack.c.b16 %v1772, %v1770
      %v1803 = vpack.c.b16 %v1773, %v1771
      %v1804 = vpack.c.b16 %v1776, %v1774
      %v1805 = vpack.c.b16 %v1777, %v1775
      %v1806 = vpack.c.b16 %v1780, %v1778
      %v1807 = vpack.c.b16 %v1781, %v1779
      %v1808 = vpack.c.b16 %v1784, %v1782
      %v1809 = vpack.c.b16 %v1785, %v1783
      %v1810 = vpack.c.b16 %v1788, %v1786
      %v1811 = vpack.c.b16 %v1789, %v1787
      %v1812 = vpack.c.b16 %v1792, %v1790
      %v1813 = vpack.c.b16 %v1793, %v1791
      %v1814 = vpack.c.b16 %v1796, %v1794
      %v1815 = vpack.c.b16 %v1797, %v1795
      %v1816 = vpack.c.b16 %v1800, %v1798
      %v1817 = vpack.c.b16 %v1801, %v1799
      %1834 = vmatprep.subr.bf16.mxu0 %v1817
      %1835 = vmatpush1.bf16.msra.mxu0 %v1816
      %1836 = vmatprep.subr.bf16.mxu0 %v1815
      %1837 = vmatpush1.bf16.msra.mxu0 %v1814
      %1838 = vmatprep.subr.bf16.mxu0 %v1813
      %1839 = vmatpush1.bf16.msra.mxu0 %v1812
      %1840 = vmatprep.subr.bf16.mxu0 %v1811
      %1841 = vmatpush1.bf16.msra.mxu0 %v1810
      %1842 = vmatprep.subr.bf16.mxu0 %v1809
      %1843 = vmatpush1.bf16.msra.mxu0 %v1808
      %1844 = vmatprep.subr.bf16.mxu0 %v1807
      %1845 = vmatpush1.bf16.msra.mxu0 %v1806
      %1846 = vmatprep.subr.bf16.mxu0 %v1805
      %1847 = vmatpush1.bf16.msra.mxu0 %v1804
      %1848 = vmatprep.subr.bf16.mxu0 %v1803
      %1849 = vmatpush1.bf16.msra.mxu0 %v1802
      %1850 = vmatprep.subr.bf16.mxu0 0
      %1851 = vmatpush2.bf16.msra.mxu0 0
      %1852 = vmatprep.subr.bf16.mxu0 0
      %1853 = vmatpush2.bf16.msra.mxu0 0
      %1854 = vmatprep.subr.bf16.mxu0 0
      %1855 = vmatpush2.bf16.msra.mxu0 0
      %1856 = vmatprep.subr.bf16.mxu0 0
      %1857 = vmatpush2.bf16.msra.mxu0 0
      %1858 = vmatprep.subr.bf16.mxu0 0
      %1859 = vmatpush2.bf16.msra.mxu0 0
      %1860 = vmatprep.subr.bf16.mxu0 0
      %1861 = vmatpush2.bf16.msra.mxu0 0
      %1862 = vmatprep.subr.bf16.mxu0 0
      %1863 = vmatpush2.bf16.msra.mxu0 0
      %1864 = vmatprep.subr.bf16.mxu0 0
      %1865 = vmatpush2.bf16.msra.mxu0 0
      %1866 = vmatprep.mubr.bf16.mxu0 0
      %1867 = vmatmul.mubr.bf16.gmra.mxu0 %v1733
      %v1868 = vpop.f32.mrf.mxu0
      %v1869 = vadd.f32 0.0, %v1868
      %v1870 = vpop.f32.mrf.mxu0
      %v1871 = vadd.f32 0.0, %v1870
      %v1872 = vpop.f32.mrf.mxu0
      %v1873 = vadd.f32 0.0, %v1872
      %v1874 = vpop.f32.mrf.mxu0
      %v1875 = vadd.f32 0.0, %v1874
      %1876 = vmatprep.mubr.bf16.mxu0 0
      %1877 = vmatmul.mubr.bf16.gmra.mxu0 %v1734
      %v1878 = vpop.f32.mrf.mxu0
      %v1879 = vadd.f32 0.0, %v1878
      %v1880 = vpop.f32.mrf.mxu0
      %v1881 = vadd.f32 0.0, %v1880
      %v1882 = vpop.f32.mrf.mxu0
      %v1883 = vadd.f32 0.0, %v1882
      %v1884 = vpop.f32.mrf.mxu0
      %v1885 = vadd.f32 0.0, %v1884
      %1886 = vmatprep.mubr.bf16.mxu0 0
      %1887 = vmatmul.mubr.bf16.gmra.mxu0 %v1735
      %v1888 = vpop.f32.mrf.mxu0
      %v1889 = vadd.f32 0.0, %v1888
      %v1890 = vpop.f32.mrf.mxu0
      %v1891 = vadd.f32 0.0, %v1890
      %v1892 = vpop.f32.mrf.mxu0
      %v1893 = vadd.f32 0.0, %v1892
      %v1894 = vpop.f32.mrf.mxu0
      %v1895 = vadd.f32 0.0, %v1894
      %1896 = vmatprep.mubr.bf16.mxu0 0
      %1897 = vmatmul.mubr.bf16.gmra.mxu0 %v1736
      %v1898 = vpop.f32.mrf.mxu0
      %v1899 = vadd.f32 0.0, %v1898
      %v1900 = vpop.f32.mrf.mxu0
      %v1901 = vadd.f32 0.0, %v1900
      %v1902 = vpop.f32.mrf.mxu0
      %v1903 = vadd.f32 0.0, %v1902
      %v1904 = vpop.f32.mrf.mxu0
      %v1905 = vadd.f32 0.0, %v1904
      %1906 = vdwg.mxu0
      %v1923 = vunpack.c.l.b16 %v1611
      %v1924 = vunpack.c.h.b16 %v1611
      %v1925 = vunpack.c.l.b16 %v1612
      %v1926 = vunpack.c.h.b16 %v1612
      %v1927 = vunpack.c.l.b16 %v1613
      %v1928 = vunpack.c.h.b16 %v1613
      %v1929 = vunpack.c.l.b16 %v1614
      %v1930 = vunpack.c.h.b16 %v1614
      %v1931 = vunpack.c.l.b16 %v1615
      %v1932 = vunpack.c.h.b16 %v1615
      %v1933 = vunpack.c.l.b16 %v1616
      %v1934 = vunpack.c.h.b16 %v1616
      %v1935 = vunpack.c.l.b16 %v1617
      %v1936 = vunpack.c.h.b16 %v1617
      %v1937 = vunpack.c.l.b16 %v1618
      %v1938 = vunpack.c.h.b16 %v1618
      %v1939 = vunpack.c.l.b16 %v1619
      %v1940 = vunpack.c.h.b16 %v1619
      %v1941 = vunpack.c.l.b16 %v1620
      %v1942 = vunpack.c.h.b16 %v1620
      %v1943 = vunpack.c.l.b16 %v1621
      %v1944 = vunpack.c.h.b16 %v1621
      %v1945 = vunpack.c.l.b16 %v1622
      %v1946 = vunpack.c.h.b16 %v1622
      %v1947 = vunpack.c.l.b16 %v1623
      %v1948 = vunpack.c.h.b16 %v1623
      %v1949 = vunpack.c.l.b16 %v1624
      %v1950 = vunpack.c.h.b16 %v1624
      %v1951 = vunpack.c.l.b16 %v1625
      %v1952 = vunpack.c.h.b16 %v1625
      %v1953 = vunpack.c.l.b16 %v1626
      %v1954 = vunpack.c.h.b16 %v1626
      %v1955 = vpack.c.b16 %v1925, %v1923
      %v1956 = vpack.c.b16 %v1926, %v1924
      %v1957 = vpack.c.b16 %v1929, %v1927
      %v1958 = vpack.c.b16 %v1930, %v1928
      %v1959 = vpack.c.b16 %v1933, %v1931
      %v1960 = vpack.c.b16 %v1934, %v1932
      %v1961 = vpack.c.b16 %v1937, %v1935
      %v1962 = vpack.c.b16 %v1938, %v1936
      %v1963 = vpack.c.b16 %v1941, %v1939
      %v1964 = vpack.c.b16 %v1942, %v1940
      %v1965 = vpack.c.b16 %v1945, %v1943
      %v1966 = vpack.c.b16 %v1946, %v1944
      %v1967 = vpack.c.b16 %v1949, %v1947
      %v1968 = vpack.c.b16 %v1950, %v1948
      %v1969 = vpack.c.b16 %v1953, %v1951
      %v1970 = vpack.c.b16 %v1954, %v1952
      %1987 = vmatprep.subr.bf16.mxu0 %v1970
      %1988 = vmatpush1.bf16.msra.mxu0 %v1969
      %1989 = vmatprep.subr.bf16.mxu0 %v1968
      %1990 = vmatpush1.bf16.msra.mxu0 %v1967
      %1991 = vmatprep.subr.bf16.mxu0 %v1966
      %1992 = vmatpush1.bf16.msra.mxu0 %v1965
      %1993 = vmatprep.subr.bf16.mxu0 %v1964
      %1994 = vmatpush1.bf16.msra.mxu0 %v1963
      %1995 = vmatprep.subr.bf16.mxu0 %v1962
      %1996 = vmatpush1.bf16.msra.mxu0 %v1961
      %1997 = vmatprep.subr.bf16.mxu0 %v1960
      %1998 = vmatpush1.bf16.msra.mxu0 %v1959
      %1999 = vmatprep.subr.bf16.mxu0 %v1958
      %2000 = vmatpush1.bf16.msra.mxu0 %v1957
      %2001 = vmatprep.subr.bf16.mxu0 %v1956
      %2002 = vmatpush1.bf16.msra.mxu0 %v1955
      %2003 = vmatprep.subr.bf16.mxu0 0
      %2004 = vmatpush2.bf16.msra.mxu0 0
      %2005 = vmatprep.subr.bf16.mxu0 0
      %2006 = vmatpush2.bf16.msra.mxu0 0
      %2007 = vmatprep.subr.bf16.mxu0 0
      %2008 = vmatpush2.bf16.msra.mxu0 0
      %2009 = vmatprep.subr.bf16.mxu0 0
      %2010 = vmatpush2.bf16.msra.mxu0 0
      %2011 = vmatprep.subr.bf16.mxu0 0
      %2012 = vmatpush2.bf16.msra.mxu0 0
      %2013 = vmatprep.subr.bf16.mxu0 0
      %2014 = vmatpush2.bf16.msra.mxu0 0
      %2015 = vmatprep.subr.bf16.mxu0 0
      %2016 = vmatpush2.bf16.msra.mxu0 0
      %2017 = vmatprep.subr.bf16.mxu0 0
      %2018 = vmatpush2.bf16.msra.mxu0 0
      %2019 = vmatprep.mubr.bf16.mxu0 0
      %2020 = vmatmul.mubr.bf16.gmra.mxu0 %v1607
      %v2021 = vpop.f32.mrf.mxu0
      %v2022 = vadd.f32 %v1869, %v2021
      %v2023 = vpop.f32.mrf.mxu0
      %v2024 = vadd.f32 %v1871, %v2023
      %v2025 = vpop.f32.mrf.mxu0
      %v2026 = vadd.f32 %v1873, %v2025
      %v2027 = vpop.f32.mrf.mxu0
      %v2028 = vadd.f32 %v1875, %v2027
      %2029 = vmatprep.mubr.bf16.mxu0 0
      %2030 = vmatmul.mubr.bf16.gmra.mxu0 %v1608
      %v2031 = vpop.f32.mrf.mxu0
      %v2032 = vadd.f32 %v1879, %v2031
      %v2033 = vpop.f32.mrf.mxu0
      %v2034 = vadd.f32 %v1881, %v2033
      %v2035 = vpop.f32.mrf.mxu0
      %v2036 = vadd.f32 %v1883, %v2035
      %v2037 = vpop.f32.mrf.mxu0
      %v2038 = vadd.f32 %v1885, %v2037
      %2039 = vmatprep.mubr.bf16.mxu0 0
      %2040 = vmatmul.mubr.bf16.gmra.mxu0 %v1609
      %v2041 = vpop.f32.mrf.mxu0
      %v2042 = vadd.f32 %v1889, %v2041
      %v2043 = vpop.f32.mrf.mxu0
      %v2044 = vadd.f32 %v1891, %v2043
      %v2045 = vpop.f32.mrf.mxu0
      %v2046 = vadd.f32 %v1893, %v2045
      %v2047 = vpop.f32.mrf.mxu0
      %v2048 = vadd.f32 %v1895, %v2047
      %2049 = vmatprep.mubr.bf16.mxu0 0
      %2050 = vmatmul.mubr.bf16.gmra.mxu0 %v1610
      %v2051 = vpop.f32.mrf.mxu0
      %v2052 = vadd.f32 %v1899, %v2051
      %v2053 = vpop.f32.mrf.mxu0
      %v2054 = vadd.f32 %v1901, %v2053
      %v2055 = vpop.f32.mrf.mxu0
      %v2056 = vadd.f32 %v1903, %v2055
      %v2057 = vpop.f32.mrf.mxu0
      %v2058 = vadd.f32 %v1905, %v2057
      %2059 = vdwg.mxu0
      %v2060 = vmax.f32 %v2022, 0.0
      %v2061 = vmax.f32 %v2024, 0.0
      %v2062 = vmax.f32 %v2026, 0.0
      %v2063 = vmax.f32 %v2028, 0.0
      %v2064 = vmax.f32 %v2032, 0.0
      %v2065 = vmax.f32 %v2034, 0.0
      %v2066 = vmax.f32 %v2036, 0.0
      %v2067 = vmax.f32 %v2038, 0.0
      %v2068 = vmax.f32 %v2042, 0.0
      %v2069 = vmax.f32 %v2044, 0.0
      %v2070 = vmax.f32 %v2046, 0.0
      %v2071 = vmax.f32 %v2048, 0.0
      %v2072 = vmax.f32 %v2052, 0.0
      %v2073 = vmax.f32 %v2054, 0.0
      %v2074 = vmax.f32 %v2056, 0.0
      %v2075 = vmax.f32 %v2058, 0.0
      %2076 = vst [vmem:[%s275] sm:$0xff] %v2060
      %vm2077 = vcmask 523264
      %2078 = vst.msk [vmem:[%s275 + $0x8] sm:$0xff] %vm2077, %v2061
      %2079 = vst [vmem:[%s275 + $0x10] sm:$0xff] %v2062
      %2080 = vst.msk [vmem:[%s275 + $0x18] sm:$0xff] %vm2077, %v2063
      %2081 = vst [vmem:[%s275 + $0x20] sm:$0xff] %v2064
      %2082 = vst.msk [vmem:[%s275 + $0x28] sm:$0xff] %vm2077, %v2065
      %2083 = vst [vmem:[%s275 + $0x30] sm:$0xff] %v2066
      %2084 = vst.msk [vmem:[%s275 + $0x38] sm:$0xff] %vm2077, %v2067
      %2085 = vst [vmem:[%s275 + $0x40] sm:$0xff] %v2068
      %2086 = vst.msk [vmem:[%s275 + $0x48] sm:$0xff] %vm2077, %v2069
      %2087 = vst [vmem:[%s275 + $0x50] sm:$0xff] %v2070
      %2088 = vst.msk [vmem:[%s275 + $0x58] sm:$0xff] %vm2077, %v2071
      %2089 = vst [vmem:[%s275 + $0x60] sm:$0xff] %v2072
      %2090 = vst.msk [vmem:[%s275 + $0x68] sm:$0xff] %vm2077, %v2073
      %2091 = vst [vmem:[%s275 + $0x70] sm:$0xff] %v2074
      %2092 = vst.msk [vmem:[%s275 + $0x78] sm:$0xff] %vm2077, %v2075
      %p2093 = scmp.lt.s32.totalorder %s18, 1
      %s2094 = scalar_select %p2093, %s18, 1
      %s2095 = smul.addr %s2094, 16
      %s2096 = smul.addr %s2095, 8
      %s2097 = scalar_lea.vmem %s7, %s2096
      // Predicated region
      $region49: #{gen_ecal_forward.1} parent=47 // pred_check
        %p2098 = pneg %p188
      $region50: #{gen_ecal_forward.1} parent=47 // pred_check_branch
        %2100 = sbr.rel (%p2098) target = $region52
      $region51: #{gen_ecal_forward.1} parent=47 // pred_region
        _
      $region52: #{gen_ecal_forward.1} parent=47 // pred_fallthru
        _
    $region48: #{gen_ecal_forward.1} parent=5 // pred_fallthru
      _
    %p2101 = scmp.le.s32.totalorder 2, %s13
    // Predicated region
    $region53: #{gen_ecal_forward.1} parent=5 // pred_check
      %p2102 = pneg %p2101
    $region54: #{gen_ecal_forward.1} parent=5 // pred_check_branch
      %2104 = sbr.rel (%p2102) target = $region56
    $region55: #{gen_ecal_forward.1} parent=5 // pred_region
      %s2105 = ssub.s32 %s13, 2
      // Predicated region
      $region57: #{gen_ecal_forward.1} parent=55 // pred_check
        %p2106 = pneg %p194
      $region58: #{gen_ecal_forward.1} parent=55 // pred_check_branch
        %2108 = sbr.rel (%p2106) target = $region60
      $region59: #{gen_ecal_forward.1} parent=55 // pred_region
        %p2109 = scmp.lt.s32.totalorder %s19, 1
        %s2110 = scalar_select %p2109, %s19, 1
        %s2111 = smul.addr %s2110, 16
        %s2112 = smul.addr %s2111, 8
        %s2113 = scalar_lea.vmem %s7, %s2112
      $region60: #{gen_ecal_forward.1} parent=55 // pred_fallthru
        _
    $region56: #{gen_ecal_forward.1} parent=5 // pred_fallthru
      _
  $region6: #{gen_ecal_forward.1} parent=0 // loop_footer
    %s17 = sadd.s32 1, %s13
  $region7: #{gen_ecal_forward.1} parent=0 // loop_footer_branch
    %12 = sbr.rel target = $region3
  $region8: #{gen_ecal_forward.1} parent=0 // loop_exit
    _

</llo_original>
